<compile_context>
chip_gen: v6e
topology: v6e:2x2x1
jax: 0.10.0
libtpu: 0.0.40
codegen_flags: <defaults>
</compile_context>

<pallas_src>
import functools
import math

import jax
import jax.numpy as jnp
from jax.experimental import pallas as pl
from jax.experimental.pallas import tpu as pltpu


def _self_attention_kernel(*refs, heads, head_dim, causal, has_mask):
    if has_mask:
        (v_ref, k_ref, q_ref, maskt_ref,
         wv_ref, wk_ref, wq_ref, wo_ref, bo_ref,
         out_ref, qp_s, kp_s, a_s) = refs
    else:
        (v_ref, k_ref, q_ref,
         wv_ref, wk_ref, wq_ref, wo_ref, bo_ref,
         out_ref, qp_s, kp_s, a_s) = refs
        maskt_ref = None

    v = v_ref[0]                      # (L, E)  lane-dense
    k = k_ref[0]                      # (L, E)
    q = q_ref[0]                      # (Q, E)
    n_q = q.shape[0]
    n_kv = k.shape[0]
    d = head_dim

    # Fused block-diagonal projections: one (len, E) @ (E, E) matmul each
    # (contraction dim E, f32 accumulation, lane-dense outputs).  The softmax
    # scale 1/sqrt(embed_size) is already folded into wq_ref.
    vp = jnp.dot(v, wv_ref[...], preferred_element_type=jnp.float32)        # (L, E) f32
    kp_s[...] = jnp.dot(k, wk_ref[...],
                        preferred_element_type=jnp.float32).astype(kp_s.dtype)
    qp_s[...] = jnp.dot(q, wq_ref[...],
                        preferred_element_type=jnp.float32).astype(qp_s.dtype)

    # Mask predicate shared across heads, in the kernel's transposed (L, Q)
    # energy orientation (True = masked out).
    if causal:
        l_idx = jax.lax.broadcasted_iota(jnp.int32, (n_kv, n_q), 0)
        q_idx = jax.lax.broadcasted_iota(jnp.int32, (n_kv, n_q), 1)
        masked = l_idx > q_idx
    elif has_mask:
        masked = maskt_ref[0] == 0
    else:
        masked = None

    # Per-head attention.  The module's einsum('nhql,nlhd->nlhd') only needs
    # sum_q softmax(energy)[h, q, l], so each head reduces to a single (L, 1)
    # column; no (H, Q, L) attention tensor is materialized or stored.
    for h in range(heads):
        q_h = qp_s[:, pl.ds(h * d, d)]                      # (Q, D)
        k_h = kp_s[:, pl.ds(h * d, d)]                      # (L, D)
        # energy^T[l, q] = <q_h[q, :], k_h[l, :]>  (rhs-transposed MXU form)
        e_t = jax.lax.dot_general(k_h, q_h, (((1,), (1,)), ((), ())),
                                  preferred_element_type=jnp.float32)       # (L, Q)
        if masked is not None:
            e_t = jnp.where(masked, jnp.float32(-1e28), e_t)
        # softmax over l (axis 0 of the transposed energy); scale pre-folded.
        m = jnp.max(e_t, axis=0, keepdims=True)             # (1, Q)
        p = jnp.exp(e_t - m)                                # (L, Q)
        s = jnp.sum(p, axis=0, keepdims=True)               # (1, Q)
        inv = pl.reciprocal(s, approx=True)                 # EUP slot, no full-tensor divide
        inv = inv * (2.0 - s * inv)                         # one Newton step -> ~f32 accuracy
        att_t = p * inv                                     # (L, Q)
        col = jnp.sum(att_t, axis=1, keepdims=True)         # (L, 1) = sum_q att[h, q, l]
        a_s[:, pl.ds(h * d, d)] = jnp.broadcast_to(col, (n_kv, d))

    # out[l, e] = vp[l, e] * sum_q att[head(e), q, l]; head merge + fc_out are
    # fused into one lane-dense (Q, E) @ (E, E) matmul (module needs Q == L).
    out = vp * a_s[...]
    out_ref[0] = (jnp.dot(out, wo_ref[...], preferred_element_type=jnp.float32)
                  + bo_ref[...]).astype(out_ref.dtype)


def self_attention(values, keys, query, params, *, heads, mask=None,
                   causal=False, compute_dtype=jnp.float32, interpret=False):
    """Forward pass of the PyTorch SelfAttention module.

    values/keys/query: (N, L, E) in their natural layout (no host transpose).
    mask: optional (N, Q, L) array shared across heads (0 = masked out);
          ignored when causal=True (the causal mask is built in-kernel).
    """
    wv, wk, wq, wo, bo = params
    n, l_kv, e = values.shape
    n_q = query.shape[1]
    d = e // heads
    assert d * heads == e, "embed_size must be divisible by heads"
    assert keys.shape == (n, l_kv, e) and query.shape[2] == e
    # The module reshapes the value_len-indexed attention output into
    # (N, query_len, E); this is only well-formed when all lengths agree.
    assert n_q == l_kv and keys.shape[1] == l_kv, \
        "SelfAttention semantics require query_len == key_len == value_len"

    # Host-side weight prep (tiny): block-diagonal per-head projections so the
    # kernel does full-E contractions, fc_out weight pre-transposed, and the
    # softmax 1/sqrt(E) scale folded into W_q.
    eye = jnp.eye(heads, dtype=jnp.float32)
    wv_blk = jnp.kron(eye, wv.T.astype(jnp.float32))                  # (E, E)
    wk_blk = jnp.kron(eye, wk.T.astype(jnp.float32))                  # (E, E)
    wq_blk = jnp.kron(eye, wq.T.astype(jnp.float32)) / jnp.float32(math.sqrt(e))
    wo_t = wo.T.astype(jnp.float32)                                   # (E, E)
    bo_row = bo.reshape(1, e).astype(jnp.float32)

    cd = compute_dtype
    v_in = values.astype(cd)
    k_in = keys.astype(cd)
    q_in = query.astype(cd)
    wv_blk, wk_blk, wq_blk, wo_t = (w.astype(cd) for w in (wv_blk, wk_blk, wq_blk, wo_t))

    has_mask = (mask is not None) and (not causal)

    in_specs = [
        pl.BlockSpec((1, l_kv, e), lambda i: (i, 0, 0)),    # values
        pl.BlockSpec((1, l_kv, e), lambda i: (i, 0, 0)),    # keys
        pl.BlockSpec((1, n_q, e), lambda i: (i, 0, 0)),     # query
    ]
    inputs = [v_in, k_in, q_in]
    if has_mask:
        # TODO(synk): per-head (N, H, Q, L) masks would need an extra head-indexed
        # input; this fast path assumes the mask is shared across heads.
        mask_t = jnp.swapaxes(jnp.asarray(mask).astype(jnp.int32), 1, 2)   # (N, L, Q)
        in_specs.append(pl.BlockSpec((1, l_kv, n_q), lambda i: (i, 0, 0)))
        inputs.append(mask_t)
    in_specs += [
        pl.BlockSpec((e, e), lambda i: (0, 0)),             # W_v block-diag
        pl.BlockSpec((e, e), lambda i: (0, 0)),             # W_k block-diag
        pl.BlockSpec((e, e), lambda i: (0, 0)),             # W_q block-diag (pre-scaled)
        pl.BlockSpec((e, e), lambda i: (0, 0)),             # fc_out weight (transposed)
        pl.BlockSpec((1, e), lambda i: (0, 0)),             # fc_out bias
    ]
    inputs += [wv_blk, wk_blk, wq_blk, wo_t, bo_row]

    kernel = functools.partial(_self_attention_kernel, heads=heads, head_dim=d,
                               causal=causal, has_mask=has_mask)

    # TODO(synk): for long sequences (v7x 64 MiB VMEM) tile Q/L with an online
    # softmax + running att-sum accumulator; whole-sequence blocks per batch are
    # fine at these shapes.
    return pl.pallas_call(
        kernel,
        out_shape=jax.ShapeDtypeStruct((n, n_q, e), jnp.float32),
        grid=(n,),
        in_specs=in_specs,
        out_specs=pl.BlockSpec((1, n_q, e), lambda i: (i, 0, 0)),
        scratch_shapes=[
            pltpu.VMEM((n_q, e), cd),            # projected queries
            pltpu.VMEM((l_kv, e), cd),           # projected keys
            pltpu.VMEM((l_kv, e), jnp.float32),  # per-(l, e) attention-sum scale map
        ],
        compiler_params=pltpu.CompilerParams(dimension_semantics=("parallel",)),
        interpret=interpret,
    )(*inputs)


def reference(values, keys, query, mask, params, heads):
    # Pure-JAX mirror of the PyTorch forward (including the original einsum).
    N, L, E = values.shape
    Q = query.shape[1]
    D = E // heads
    wv, wk, wq, wo, bo = params
    v = jnp.einsum('nlhd,ed->nlhe', values.reshape(N, L, heads, D), wv)
    k = jnp.einsum('nlhd,ed->nlhe', keys.reshape(N, L, heads, D), wk)
    q = jnp.einsum('nqhd,ed->nqhe', query.reshape(N, Q, heads, D), wq)
    energy = jnp.einsum('nqhd,nkhd->nhqk', q, k)
    if mask is not None:
        energy = jnp.where(mask == 0, jnp.float32(-1e28), energy)
    att = jax.nn.softmax(energy / jnp.float32(math.sqrt(E)), axis=3)
    out = jnp.einsum('nhql,nlhd->nlhd', att, v).reshape(N, Q, heads * D)
    return out @ wo.T + bo


if __name__ == "__main__":
    N, L, E, H = 2, 8, 32, 4
    D = E // H

    key = jax.random.PRNGKey(0)
    kv_, kk_, kq_, kwv, kwk, kwq, kwo, kbo = jax.random.split(key, 8)
    values = jax.random.normal(kv_, (N, L, E), jnp.float32)
    keys_ = jax.random.normal(kk_, (N, L, E), jnp.float32)
    query = jax.random.normal(kq_, (N, L, E), jnp.float32)

    # Deterministic synthetic parameters (module __init__ shapes).
    wv = jax.random.normal(kwv, (D, D), jnp.float32) * 0.2
    wk = jax.random.normal(kwk, (D, D), jnp.float32) * 0.2
    wq = jax.random.normal(kwq, (D, D), jnp.float32) * 0.2
    wo = jax.random.normal(kwo, (E, E), jnp.float32) * 0.1
    bo = jax.random.normal(kbo, (E,), jnp.float32) * 0.1
    params = (wv, wk, wq, wo, bo)

    # Causal mask: (Q, L) -> head-shared (N, Q, L) for the kernel's explicit
    # mask path and (N, H, Q, L) for the reference.
    causal_ql = (jnp.arange(L)[None, :] <= jnp.arange(L)[:, None]).astype(jnp.int32)
    mask_nql = jnp.broadcast_to(causal_ql, (N, L, L))
    mask_ref4 = jnp.broadcast_to(causal_ql, (N, H, L, L))

    ref = reference(values, keys_, query, mask_ref4, params, H)

    # 1) Primary path: causal mask generated in-kernel (no mask DMA at all).
    out_causal = jax.block_until_ready(
        self_attention(values, keys_, query, params, heads=H, causal=True))
    assert out_causal.shape == (N, L, E)
    assert jnp.allclose(out_causal, ref, rtol=1e-4, atol=1e-4), \
        float(jnp.max(jnp.abs(out_causal - ref)))

    # 2) Explicit (head-shared, compact) mask path.
    out_masked = jax.block_until_ready(
        self_attention(values, keys_, query, params, heads=H, mask=mask_nql))
    assert jnp.allclose(out_masked, ref, rtol=1e-4, atol=1e-4), \
        float(jnp.max(jnp.abs(out_masked - ref)))

    # 3) bfloat16 MXU inputs/weights (recommended on v6e/v7x), f32 softmax/accum.
    out_bf16 = jax.block_until_ready(
        self_attention(values, keys_, query, params, heads=H, causal=True,
                       compute_dtype=jnp.bfloat16))
    assert jnp.allclose(out_bf16, ref, rtol=5e-2, atol=5e-2), \
        float(jnp.max(jnp.abs(out_bf16 - ref)))

    print("KERNEL_OK")
</pallas_src>

<mosaic_0001>
module attributes {stable_mosaic.version = 11 : i64} {
  func.func @_self_attention_kernel(%arg0: i32, %arg1: memref<1x8x32xf32, #tpu.memory_space<vmem>>, %arg2: memref<1x8x32xf32, #tpu.memory_space<vmem>>, %arg3: memref<1x8x32xf32, #tpu.memory_space<vmem>>, %arg4: memref<32x32xf32, #tpu.memory_space<vmem>>, %arg5: memref<32x32xf32, #tpu.memory_space<vmem>>, %arg6: memref<32x32xf32, #tpu.memory_space<vmem>>, %arg7: memref<32x32xf32, #tpu.memory_space<vmem>>, %arg8: memref<1x32xf32, #tpu.memory_space<vmem>>, %arg9: memref<1x8x32xf32, #tpu.memory_space<vmem>>, %arg10: memref<8x32xf32, #tpu.memory_space<vmem>>, %arg11: memref<8x32xf32, #tpu.memory_space<vmem>>, %arg12: memref<8x32xf32, #tpu.memory_space<vmem>>) attributes {dimension_semantics = [#tpu.dimension_semantics<parallel>], iteration_bounds = array<i64: 2>, scalar_prefetch = 0 : i64, scratch_operands = 3 : i64, tpu.core_type = #tpu.core_type<tc>, window_params = [{transform_indices = @transform_0, window_bounds = array<i64: 1, 8, 32>}, {transform_indices = @transform_1, window_bounds = array<i64: 1, 8, 32>}, {transform_indices = @transform_2, window_bounds = array<i64: 1, 8, 32>}, {pipeline_mode = #tpu.pipeline_mode<synchronous>, transform_indices = @transform_3, window_bounds = array<i64: 32, 32>}, {pipeline_mode = #tpu.pipeline_mode<synchronous>, transform_indices = @transform_4, window_bounds = array<i64: 32, 32>}, {pipeline_mode = #tpu.pipeline_mode<synchronous>, transform_indices = @transform_5, window_bounds = array<i64: 32, 32>}, {pipeline_mode = #tpu.pipeline_mode<synchronous>, transform_indices = @transform_6, window_bounds = array<i64: 32, 32>}, {pipeline_mode = #tpu.pipeline_mode<synchronous>, transform_indices = @transform_7, window_bounds = array<i64: 1, 32>}, {transform_indices = @transform_8, window_bounds = array<i64: 1, 8, 32>}]} {
    %c0 = arith.constant 0 : index
    %c0_0 = arith.constant 0 : index
    %c0_1 = arith.constant 0 : index
    %0 = vector.load %arg1[%c0, %c0_0, %c0_1] : memref<1x8x32xf32, #tpu.memory_space<vmem>>, vector<1x8x32xf32>
    %1 = vector.shape_cast %0 : vector<1x8x32xf32> to vector<8x32xf32>
    %c0_2 = arith.constant 0 : index
    %c0_3 = arith.constant 0 : index
    %c0_4 = arith.constant 0 : index
    %2 = vector.load %arg2[%c0_2, %c0_3, %c0_4] : memref<1x8x32xf32, #tpu.memory_space<vmem>>, vector<1x8x32xf32>
    %3 = vector.shape_cast %2 : vector<1x8x32xf32> to vector<8x32xf32>
    %c0_5 = arith.constant 0 : index
    %c0_6 = arith.constant 0 : index
    %c0_7 = arith.constant 0 : index
    %4 = vector.load %arg3[%c0_5, %c0_6, %c0_7] : memref<1x8x32xf32, #tpu.memory_space<vmem>>, vector<1x8x32xf32>
    %5 = vector.shape_cast %4 : vector<1x8x32xf32> to vector<8x32xf32>
    %c0_8 = arith.constant 0 : index
    %c0_9 = arith.constant 0 : index
    %6 = vector.load %arg4[%c0_8, %c0_9] : memref<32x32xf32, #tpu.memory_space<vmem>>, vector<32x32xf32>
    %cst = arith.constant dense<0.000000e+00> : vector<8x32xf32>
    %7 = tpu.matmul %1, %6, %cst {dimension_numbers = #tpu.dot_dimension_numbers<[1], [0], [0], [1], [0, 0, 1, 1], [], []>} : vector<8x32xf32>, vector<32x32xf32>, vector<8x32xf32> -> vector<8x32xf32>
    %c0_10 = arith.constant 0 : index
    %c0_11 = arith.constant 0 : index
    %8 = vector.load %arg5[%c0_10, %c0_11] : memref<32x32xf32, #tpu.memory_space<vmem>>, vector<32x32xf32>
    %cst_12 = arith.constant dense<0.000000e+00> : vector<8x32xf32>
    %9 = tpu.matmul %3, %8, %cst_12 {dimension_numbers = #tpu.dot_dimension_numbers<[1], [0], [0], [1], [0, 0, 1, 1], [], []>} : vector<8x32xf32>, vector<32x32xf32>, vector<8x32xf32> -> vector<8x32xf32>
    %c0_13 = arith.constant 0 : index
    %c0_14 = arith.constant 0 : index
    %10 = vector.load %arg11[%c0_13, %c0_14] : memref<8x32xf32, #tpu.memory_space<vmem>>, vector<8x32xf32>
    tpu.vector_store %arg11[%c0_13, %c0_14], %9 {strides = array<i32>} : memref<8x32xf32, #tpu.memory_space<vmem>>, vector<8x32xf32>,
    %c0_15 = arith.constant 0 : index
    %c0_16 = arith.constant 0 : index
    %11 = vector.load %arg6[%c0_15, %c0_16] : memref<32x32xf32, #tpu.memory_space<vmem>>, vector<32x32xf32>
    %cst_17 = arith.constant dense<0.000000e+00> : vector<8x32xf32>
    %12 = tpu.matmul %5, %11, %cst_17 {dimension_numbers = #tpu.dot_dimension_numbers<[1], [0], [0], [1], [0, 0, 1, 1], [], []>} : vector<8x32xf32>, vector<32x32xf32>, vector<8x32xf32> -> vector<8x32xf32>
    %c0_18 = arith.constant 0 : index
    %c0_19 = arith.constant 0 : index
    %13 = vector.load %arg10[%c0_18, %c0_19] : memref<8x32xf32, #tpu.memory_space<vmem>>, vector<8x32xf32>
    tpu.vector_store %arg10[%c0_18, %c0_19], %12 {strides = array<i32>} : memref<8x32xf32, #tpu.memory_space<vmem>>, vector<8x32xf32>,
    %14 = tpu.iota {dimensions = array<i32: 0>} : vector<8x8xi32>
    %15 = tpu.iota {dimensions = array<i32: 1>} : vector<8x8xi32>
    %16 = arith.cmpi sgt, %14, %15 : vector<8x8xi32>
    %c0_20 = arith.constant 0 : index
    %c0_21 = arith.constant 0 : index
    %17 = vector.load %arg10[%c0_20, %c0_21] : memref<8x32xf32, #tpu.memory_space<vmem>>, vector<8x8xf32>
    %c0_22 = arith.constant 0 : index
    %c0_23 = arith.constant 0 : index
    %18 = vector.load %arg11[%c0_22, %c0_23] : memref<8x32xf32, #tpu.memory_space<vmem>>, vector<8x8xf32>
    %cst_24 = arith.constant dense<0.000000e+00> : vector<8x8xf32>
    %19 = tpu.matmul %18, %17, %cst_24 {dimension_numbers = #tpu.dot_dimension_numbers<[1], [1], [0], [0], [0, 0, 1, 0], [], []>} : vector<8x8xf32>, vector<8x8xf32>, vector<8x8xf32> -> vector<8x8xf32>
    %cst_25 = arith.constant -9.99999944E+27 : f32
    %20 = vector.broadcast %cst_25 : f32 to vector<8x8xf32>
    %21 = arith.select %16, %20, %19 : vector<8x8xi1>, vector<8x8xf32>
    %cst_26 = arith.constant dense<0xFF800000> : vector<8xf32>
    %22 = vector.multi_reduction <maximumf>, %21, %cst_26 [0] : vector<8x8xf32> to vector<8xf32>
    %23 = vector.shape_cast %22 : vector<8xf32> to vector<1x8xf32>
    %24 = vector.broadcast %23 : vector<1x8xf32> to vector<8x8xf32>
    %25 = arith.subf %21, %24 : vector<8x8xf32>
    %26 = math.exp %25 : vector<8x8xf32>
    %cst_27 = arith.constant dense<0.000000e+00> : vector<8xf32>
    %27 = vector.multi_reduction <add>, %26, %cst_27 [0] : vector<8x8xf32> to vector<8xf32>
    %28 = vector.shape_cast %27 : vector<8xf32> to vector<1x8xf32>
    %29 = tpu.reciprocal %28 {approx = true} : vector<1x8xf32> -> vector<1x8xf32>
    %30 = arith.mulf %28, %29 : vector<1x8xf32>
    %cst_28 = arith.constant 2.000000e+00 : f32
    %31 = vector.broadcast %cst_28 : f32 to vector<1x8xf32>
    %32 = arith.subf %31, %30 : vector<1x8xf32>
    %33 = arith.mulf %29, %32 : vector<1x8xf32>
    %34 = vector.broadcast %33 : vector<1x8xf32> to vector<8x8xf32>
    %35 = arith.mulf %26, %34 : vector<8x8xf32>
    %cst_29 = arith.constant dense<0.000000e+00> : vector<8xf32>
    %36 = vector.multi_reduction <add>, %35, %cst_29 [1] : vector<8x8xf32> to vector<8xf32>
    %37 = vector.shape_cast %36 : vector<8xf32> to vector<8x1xf32>
    %38 = vector.shape_cast %37 : vector<8x1xf32> to vector<8x1xf32>
    %39 = vector.broadcast %38 : vector<8x1xf32> to vector<8x8xf32>
    %c0_30 = arith.constant 0 : index
    %c0_31 = arith.constant 0 : index
    %40 = vector.load %arg12[%c0_30, %c0_31] : memref<8x32xf32, #tpu.memory_space<vmem>>, vector<8x8xf32>
    tpu.vector_store %arg12[%c0_30, %c0_31], %39 {strides = array<i32>} : memref<8x32xf32, #tpu.memory_space<vmem>>, vector<8x8xf32>,
    %c0_32 = arith.constant 0 : index
    %c8 = arith.constant 8 : index
    %41 = vector.load %arg10[%c0_32, %c8] : memref<8x32xf32, #tpu.memory_space<vmem>>, vector<8x8xf32>
    %c0_33 = arith.constant 0 : index
    %c8_34 = arith.constant 8 : index
    %42 = vector.load %arg11[%c0_33, %c8_34] : memref<8x32xf32, #tpu.memory_space<vmem>>, vector<8x8xf32>
    %cst_35 = arith.constant dense<0.000000e+00> : vector<8x8xf32>
    %43 = tpu.matmul %42, %41, %cst_35 {dimension_numbers = #tpu.dot_dimension_numbers<[1], [1], [0], [0], [0, 0, 1, 0], [], []>} : vector<8x8xf32>, vector<8x8xf32>, vector<8x8xf32> -> vector<8x8xf32>
    %cst_36 = arith.constant -9.99999944E+27 : f32
    %44 = vector.broadcast %cst_36 : f32 to vector<8x8xf32>
    %45 = arith.select %16, %44, %43 : vector<8x8xi1>, vector<8x8xf32>
    %cst_37 = arith.constant dense<0xFF800000> : vector<8xf32>
    %46 = vector.multi_reduction <maximumf>, %45, %cst_37 [0] : vector<8x8xf32> to vector<8xf32>
    %47 = vector.shape_cast %46 : vector<8xf32> to vector<1x8xf32>
    %48 = vector.broadcast %47 : vector<1x8xf32> to vector<8x8xf32>
    %49 = arith.subf %45, %48 : vector<8x8xf32>
    %50 = math.exp %49 : vector<8x8xf32>
    %cst_38 = arith.constant dense<0.000000e+00> : vector<8xf32>
    %51 = vector.multi_reduction <add>, %50, %cst_38 [0] : vector<8x8xf32> to vector<8xf32>
    %52 = vector.shape_cast %51 : vector<8xf32> to vector<1x8xf32>
    %53 = tpu.reciprocal %52 {approx = true} : vector<1x8xf32> -> vector<1x8xf32>
    %54 = arith.mulf %52, %53 : vector<1x8xf32>
    %cst_39 = arith.constant 2.000000e+00 : f32
    %55 = vector.broadcast %cst_39 : f32 to vector<1x8xf32>
    %56 = arith.subf %55, %54 : vector<1x8xf32>
    %57 = arith.mulf %53, %56 : vector<1x8xf32>
    %58 = vector.broadcast %57 : vector<1x8xf32> to vector<8x8xf32>
    %59 = arith.mulf %50, %58 : vector<8x8xf32>
    %cst_40 = arith.constant dense<0.000000e+00> : vector<8xf32>
    %60 = vector.multi_reduction <add>, %59, %cst_40 [1] : vector<8x8xf32> to vector<8xf32>
    %61 = vector.shape_cast %60 : vector<8xf32> to vector<8x1xf32>
    %62 = vector.shape_cast %61 : vector<8x1xf32> to vector<8x1xf32>
    %63 = vector.broadcast %62 : vector<8x1xf32> to vector<8x8xf32>
    %c0_41 = arith.constant 0 : index
    %c8_42 = arith.constant 8 : index
    %64 = vector.load %arg12[%c0_41, %c8_42] : memref<8x32xf32, #tpu.memory_space<vmem>>, vector<8x8xf32>
    tpu.vector_store %arg12[%c0_41, %c8_42], %63 {strides = array<i32>} : memref<8x32xf32, #tpu.memory_space<vmem>>, vector<8x8xf32>,
    %c0_43 = arith.constant 0 : index
    %c16 = arith.constant 16 : index
    %65 = vector.load %arg10[%c0_43, %c16] : memref<8x32xf32, #tpu.memory_space<vmem>>, vector<8x8xf32>
    %c0_44 = arith.constant 0 : index
    %c16_45 = arith.constant 16 : index
    %66 = vector.load %arg11[%c0_44, %c16_45] : memref<8x32xf32, #tpu.memory_space<vmem>>, vector<8x8xf32>
    %cst_46 = arith.constant dense<0.000000e+00> : vector<8x8xf32>
    %67 = tpu.matmul %66, %65, %cst_46 {dimension_numbers = #tpu.dot_dimension_numbers<[1], [1], [0], [0], [0, 0, 1, 0], [], []>} : vector<8x8xf32>, vector<8x8xf32>, vector<8x8xf32> -> vector<8x8xf32>
    %cst_47 = arith.constant -9.99999944E+27 : f32
    %68 = vector.broadcast %cst_47 : f32 to vector<8x8xf32>
    %69 = arith.select %16, %68, %67 : vector<8x8xi1>, vector<8x8xf32>
    %cst_48 = arith.constant dense<0xFF800000> : vector<8xf32>
    %70 = vector.multi_reduction <maximumf>, %69, %cst_48 [0] : vector<8x8xf32> to vector<8xf32>
    %71 = vector.shape_cast %70 : vector<8xf32> to vector<1x8xf32>
    %72 = vector.broadcast %71 : vector<1x8xf32> to vector<8x8xf32>
    %73 = arith.subf %69, %72 : vector<8x8xf32>
    %74 = math.exp %73 : vector<8x8xf32>
    %cst_49 = arith.constant dense<0.000000e+00> : vector<8xf32>
    %75 = vector.multi_reduction <add>, %74, %cst_49 [0] : vector<8x8xf32> to vector<8xf32>
    %76 = vector.shape_cast %75 : vector<8xf32> to vector<1x8xf32>
    %77 = tpu.reciprocal %76 {approx = true} : vector<1x8xf32> -> vector<1x8xf32>
    %78 = arith.mulf %76, %77 : vector<1x8xf32>
    %cst_50 = arith.constant 2.000000e+00 : f32
    %79 = vector.broadcast %cst_50 : f32 to vector<1x8xf32>
    %80 = arith.subf %79, %78 : vector<1x8xf32>
    %81 = arith.mulf %77, %80 : vector<1x8xf32>
    %82 = vector.broadcast %81 : vector<1x8xf32> to vector<8x8xf32>
    %83 = arith.mulf %74, %82 : vector<8x8xf32>
    %cst_51 = arith.constant dense<0.000000e+00> : vector<8xf32>
    %84 = vector.multi_reduction <add>, %83, %cst_51 [1] : vector<8x8xf32> to vector<8xf32>
    %85 = vector.shape_cast %84 : vector<8xf32> to vector<8x1xf32>
    %86 = vector.shape_cast %85 : vector<8x1xf32> to vector<8x1xf32>
    %87 = vector.broadcast %86 : vector<8x1xf32> to vector<8x8xf32>
    %c0_52 = arith.constant 0 : index
    %c16_53 = arith.constant 16 : index
    %88 = vector.load %arg12[%c0_52, %c16_53] : memref<8x32xf32, #tpu.memory_space<vmem>>, vector<8x8xf32>
    tpu.vector_store %arg12[%c0_52, %c16_53], %87 {strides = array<i32>} : memref<8x32xf32, #tpu.memory_space<vmem>>, vector<8x8xf32>,
    %c0_54 = arith.constant 0 : index
    %c24 = arith.constant 24 : index
    %89 = vector.load %arg10[%c0_54, %c24] : memref<8x32xf32, #tpu.memory_space<vmem>>, vector<8x8xf32>
    %c0_55 = arith.constant 0 : index
    %c24_56 = arith.constant 24 : index
    %90 = vector.load %arg11[%c0_55, %c24_56] : memref<8x32xf32, #tpu.memory_space<vmem>>, vector<8x8xf32>
    %cst_57 = arith.constant dense<0.000000e+00> : vector<8x8xf32>
    %91 = tpu.matmul %90, %89, %cst_57 {dimension_numbers = #tpu.dot_dimension_numbers<[1], [1], [0], [0], [0, 0, 1, 0], [], []>} : vector<8x8xf32>, vector<8x8xf32>, vector<8x8xf32> -> vector<8x8xf32>
    %cst_58 = arith.constant -9.99999944E+27 : f32
    %92 = vector.broadcast %cst_58 : f32 to vector<8x8xf32>
    %93 = arith.select %16, %92, %91 : vector<8x8xi1>, vector<8x8xf32>
    %cst_59 = arith.constant dense<0xFF800000> : vector<8xf32>
    %94 = vector.multi_reduction <maximumf>, %93, %cst_59 [0] : vector<8x8xf32> to vector<8xf32>
    %95 = vector.shape_cast %94 : vector<8xf32> to vector<1x8xf32>
    %96 = vector.broadcast %95 : vector<1x8xf32> to vector<8x8xf32>
    %97 = arith.subf %93, %96 : vector<8x8xf32>
    %98 = math.exp %97 : vector<8x8xf32>
    %cst_60 = arith.constant dense<0.000000e+00> : vector<8xf32>
    %99 = vector.multi_reduction <add>, %98, %cst_60 [0] : vector<8x8xf32> to vector<8xf32>
    %100 = vector.shape_cast %99 : vector<8xf32> to vector<1x8xf32>
    %101 = tpu.reciprocal %100 {approx = true} : vector<1x8xf32> -> vector<1x8xf32>
    %102 = arith.mulf %100, %101 : vector<1x8xf32>
    %cst_61 = arith.constant 2.000000e+00 : f32
    %103 = vector.broadcast %cst_61 : f32 to vector<1x8xf32>
    %104 = arith.subf %103, %102 : vector<1x8xf32>
    %105 = arith.mulf %101, %104 : vector<1x8xf32>
    %106 = vector.broadcast %105 : vector<1x8xf32> to vector<8x8xf32>
    %107 = arith.mulf %98, %106 : vector<8x8xf32>
    %cst_62 = arith.constant dense<0.000000e+00> : vector<8xf32>
    %108 = vector.multi_reduction <add>, %107, %cst_62 [1] : vector<8x8xf32> to vector<8xf32>
    %109 = vector.shape_cast %108 : vector<8xf32> to vector<8x1xf32>
    %110 = vector.shape_cast %109 : vector<8x1xf32> to vector<8x1xf32>
    %111 = vector.broadcast %110 : vector<8x1xf32> to vector<8x8xf32>
    %c0_63 = arith.constant 0 : index
    %c24_64 = arith.constant 24 : index
    %112 = vector.load %arg12[%c0_63, %c24_64] : memref<8x32xf32, #tpu.memory_space<vmem>>, vector<8x8xf32>
    tpu.vector_store %arg12[%c0_63, %c24_64], %111 {strides = array<i32>} : memref<8x32xf32, #tpu.memory_space<vmem>>, vector<8x8xf32>,
    %c0_65 = arith.constant 0 : index
    %c0_66 = arith.constant 0 : index
    %113 = vector.load %arg12[%c0_65, %c0_66] : memref<8x32xf32, #tpu.memory_space<vmem>>, vector<8x32xf32>
    %114 = arith.mulf %7, %113 : vector<8x32xf32>
    %c0_67 = arith.constant 0 : index
    %c0_68 = arith.constant 0 : index
    %115 = vector.load %arg7[%c0_67, %c0_68] : memref<32x32xf32, #tpu.memory_space<vmem>>, vector<32x32xf32>
    %cst_69 = arith.constant dense<0.000000e+00> : vector<8x32xf32>
    %116 = tpu.matmul %114, %115, %cst_69 {dimension_numbers = #tpu.dot_dimension_numbers<[1], [0], [0], [1], [0, 0, 1, 1], [], []>} : vector<8x32xf32>, vector<32x32xf32>, vector<8x32xf32> -> vector<8x32xf32>
    %c0_70 = arith.constant 0 : index
    %c0_71 = arith.constant 0 : index
    %117 = vector.load %arg8[%c0_70, %c0_71] : memref<1x32xf32, #tpu.memory_space<vmem>>, vector<1x32xf32>
    %118 = vector.broadcast %117 : vector<1x32xf32> to vector<8x32xf32>
    %119 = arith.addf %116, %118 : vector<8x32xf32>
    %c0_72 = arith.constant 0 : index
    %c0_73 = arith.constant 0 : index
    %c0_74 = arith.constant 0 : index
    %120 = vector.load %arg9[%c0_72, %c0_73, %c0_74] : memref<1x8x32xf32, #tpu.memory_space<vmem>>, vector<1x8x32xf32>
    %121 = vector.shape_cast %120 : vector<1x8x32xf32> to vector<8x32xf32>
    %122 = vector.shape_cast %119 : vector<8x32xf32> to vector<1x8x32xf32>
    tpu.vector_store %arg9[%c0_72, %c0_73, %c0_74], %122 {strides = array<i32>} : memref<1x8x32xf32, #tpu.memory_space<vmem>>, vector<1x8x32xf32>,
    return
  }
  func.func @transform_0(%arg0: i32) -> (i32, i32, i32) {
    %c0_i32 = arith.constant 0 : i32
    %c0_i32_0 = arith.constant 0 : i32
    %c0_i32_1 = arith.constant 0 : i32
    return %arg0, %c0_i32, %c0_i32_0 : i32, i32, i32
  }
  func.func @transform_1(%arg0: i32) -> (i32, i32, i32) {
    %c0_i32 = arith.constant 0 : i32
    %c0_i32_0 = arith.constant 0 : i32
    %c0_i32_1 = arith.constant 0 : i32
    return %arg0, %c0_i32, %c0_i32_0 : i32, i32, i32
  }
  func.func @transform_2(%arg0: i32) -> (i32, i32, i32) {
    %c0_i32 = arith.constant 0 : i32
    %c0_i32_0 = arith.constant 0 : i32
    %c0_i32_1 = arith.constant 0 : i32
    return %arg0, %c0_i32, %c0_i32_0 : i32, i32, i32
  }
  func.func @transform_3(%arg0: i32) -> (i32, i32) {
    %c0_i32 = arith.constant 0 : i32
    %c0_i32_0 = arith.constant 0 : i32
    %c0_i32_1 = arith.constant 0 : i32
    return %c0_i32, %c0_i32_0 : i32, i32
  }
  func.func @transform_4(%arg0: i32) -> (i32, i32) {
    %c0_i32 = arith.constant 0 : i32
    %c0_i32_0 = arith.constant 0 : i32
    %c0_i32_1 = arith.constant 0 : i32
    return %c0_i32, %c0_i32_0 : i32, i32
  }
  func.func @transform_5(%arg0: i32) -> (i32, i32) {
    %c0_i32 = arith.constant 0 : i32
    %c0_i32_0 = arith.constant 0 : i32
    %c0_i32_1 = arith.constant 0 : i32
    return %c0_i32, %c0_i32_0 : i32, i32
  }
  func.func @transform_6(%arg0: i32) -> (i32, i32) {
    %c0_i32 = arith.constant 0 : i32
    %c0_i32_0 = arith.constant 0 : i32
    %c0_i32_1 = arith.constant 0 : i32
    return %c0_i32, %c0_i32_0 : i32, i32
  }
  func.func @transform_7(%arg0: i32) -> (i32, i32) {
    %c0_i32 = arith.constant 0 : i32
    %c0_i32_0 = arith.constant 0 : i32
    %c0_i32_1 = arith.constant 0 : i32
    return %c0_i32, %c0_i32_0 : i32, i32
  }
  func.func @transform_8(%arg0: i32) -> (i32, i32, i32) {
    %c0_i32 = arith.constant 0 : i32
    %c0_i32_0 = arith.constant 0 : i32
    %c0_i32_1 = arith.constant 0 : i32
    return %arg0, %c0_i32, %c0_i32_0 : i32, i32, i32
  }
}

</mosaic_0001>

<llo_original>
// kernel: tpu_custom_call.1
$region0: #{tpu_custom_call.1}
  #allocation0 [shape = 'u32[]', space=smem, size = 0x4, offset = 0x4, fixed_abs, tag = 'smem constant byte address 0x4 - core index']
  #allocation1 [shape = 'u32[144,128]{1,0:T(1,128)}', space=vmem, size = 0x12000, scoped, tag = 'internal scratch']
  #allocation2 [shape = 'f32[8,32]{1,0:T(8,128)}', space=vmem, size = 0x1000, scoped, tag = 'scratch operand']
  #allocation3 [shape = 'f32[8,32]{1,0:T(8,128)}', space=vmem, size = 0x1000, scoped, tag = 'scratch operand']
  #allocation4 [shape = 'f32[8,32]{1,0:T(8,128)}', space=vmem, size = 0x1000, scoped, tag = 'scratch operand']
  %s0 = inlined_call_operand.hbm [shape: f32[2,8,32], index: 0, kind: input, shape index: {}]
  %s1 = inlined_call_operand.hbm [shape: f32[2,8,32], index: 1, kind: input, shape index: {}]
  %s2 = inlined_call_operand.hbm [shape: f32[2,8,32], index: 2, kind: input, shape index: {}]
  %s3 = inlined_call_operand.hbm [shape: f32[32,32], index: 3, kind: input, shape index: {}]
  %s4 = inlined_call_operand.hbm [shape: f32[32,32], index: 4, kind: input, shape index: {}]
  %s5 = inlined_call_operand.hbm [shape: f32[32,32], index: 5, kind: input, shape index: {}]
  %s6 = inlined_call_operand.hbm [shape: f32[32,32], index: 6, kind: input, shape index: {}]
  %s7 = inlined_call_operand.vmem [shape: f32[1,32], index: 7, kind: input, shape index: {}]
  %s8 = inlined_call_operand.hbm [shape: f32[2,8,32], index: 8, kind: output, shape index: {}]
  %s9 = sld [smem:[#allocation0]]
  $region93: #{tpu_custom_call.1} parent=0
    _
  %s11 = ssub.s32 1, %s9
  %s12 = scalar_select 0, %s11, %s9
  $region1: #{tpu_custom_call.1} parent=0
    #allocation5 [shape = 'u8[8192]{0}', space=vmem, size = 0x2000, scoped, tag = 'input window, operand 0']
    #allocation6 [shape = 's32[2]{0}', space=sflag, size = 0x8, scoped, tag = 'scoped memory for tpu_custom_call.1']
    #allocation7 [shape = 's32[2]{0}', space=sflag, size = 0x8, scoped, tag = 'scoped memory for tpu_custom_call.1']
    #allocation8 [shape = 'u8[8192]{0}', space=vmem, size = 0x2000, scoped, tag = 'input window, operand 1']
    #allocation9 [shape = 's32[2]{0}', space=sflag, size = 0x8, scoped, tag = 'scoped memory for tpu_custom_call.1']
    #allocation10 [shape = 'u8[8192]{0}', space=vmem, size = 0x2000, scoped, tag = 'input window, operand 2']
    #allocation11 [shape = 'u8[16384]{0}', space=vmem, size = 0x4000, scoped, tag = 'input window, operand 3, single buffered']
    #allocation12 [shape = 's32[1]{0}', space=sflag, size = 0x4, scoped, tag = 'scoped memory for tpu_custom_call.1']
    #allocation13 [shape = 'u8[16384]{0}', space=vmem, size = 0x4000, scoped, tag = 'input window, operand 4, single buffered']
    #allocation14 [shape = 'u8[16384]{0}', space=vmem, size = 0x4000, scoped, tag = 'input window, operand 5, single buffered']
    #allocation15 [shape = 's32[1]{0}', space=sflag, size = 0x4, scoped, tag = 'scoped memory for tpu_custom_call.1']
    #allocation16 [shape = 'u8[16384]{0}', space=vmem, size = 0x4000, scoped, tag = 'input window, operand 6, single buffered']
    #allocation17 [shape = 'u8[8192]{0}', space=vmem, size = 0x2000, scoped, tag = 'output window, operand 0']
    %13 = vsyncpa [#allocation6], 0
    %s14 = scalar_lea.sflag [#allocation6], 1
    %15 = vsyncpa %s14, 0
    %16 = vsyncpa [#allocation9], 0
    %s17 = scalar_lea.sflag [#allocation9], 1
    %18 = vsyncpa %s17, 0
    %19 = vsyncpa [#allocation12], 0
    %20 = vsyncpa [#allocation15], 0
    %21 = vsyncpa [#allocation7], 0
    %s22 = scalar_lea.sflag [#allocation7], 1
    %23 = vsyncpa %s22, 0
    loop: start=0, step=1, limit=4
    $region2: #{tpu_custom_call.1} parent=1 // loop_pre_header
      _
    $region3: #{tpu_custom_call.1} parent=1 // loop_header
      %s25 = sphi 0, %s29
      %p26 = scmp.ge.s32.totalorder %s25, 4
      %s35 = sphi 0, %s37
      %s38 = sphi 0, %s35
      %s39 = sphi 0, %s38
      %s55 = sphi 0, %s39
      %s61 = sphi 0, %s63
      %s64 = sphi 0, %s61
      %s65 = sphi 0, %s64
      %s81 = sphi 0, %s65
      %s87 = sphi 0, %s89
      %s90 = sphi 0, %s87
      %s91 = sphi 0, %s90
      %s107 = sphi 0, %s91
      %s111 = sphi 0, %s111
      %s113 = sphi 0, %s111
      %s114 = sphi 0, %s113
      %s128 = sphi 0, %s114
      %s132 = sphi 0, %s132
      %s134 = sphi 0, %s132
      %s135 = sphi 0, %s134
      %s149 = sphi 0, %s135
      %s153 = sphi 0, %s153
      %s155 = sphi 0, %s153
      %s156 = sphi 0, %s155
      %s170 = sphi 0, %s156
      %s174 = sphi 0, %s174
      %s176 = sphi 0, %s174
      %s177 = sphi 0, %s176
      %s191 = sphi 0, %s177
      %s195 = sphi 0, %s195
      %s197 = sphi 0, %s195
      %s198 = sphi 0, %s197
      %s212 = sphi 0, %s198
      %s218 = sphi 0, %s220
      %s221 = sphi 0, %s218
      %s222 = sphi 0, %s221
      %s238 = sphi 0, %s222
    $region4: #{tpu_custom_call.1} parent=1 // loop_header_branch
      %28 = sbr.rel (%p26) target = $region8
    $region5: #{tpu_custom_call.1} parent=1 // loop_body
      %s30 = ssub.s32 %s25, 1
      %s31 = ssub.s32 %s25, 2
      %s32 = sadd.s32 %s25, 1
      %s33 = ssub.s32 %s25, %s32
      %p34 = scmp.eq.s32.totalorder %s33, 0
      %s36 = sadd.s32 %s35, 1
      %s37 = scalar_select %p34, %s35, %s36
      %p40 = pneg %p34
      %p41 = scmp.eq.s32.totalorder %s25, 1
      %p42 = por %p40, %p41
      %p43 = scmp.ne.s32.totalorder %s35, %s38
      %p44 = scmp.eq.s32.totalorder %s25, 0
      %p45 = por %p43, %p44
      %p46 = scmp.ne.s32.totalorder %s35, %s38
      %p47 = scmp.eq.s32.totalorder %s30, 1
      %p48 = por %p46, %p47
      %p49 = scmp.ne.s32.totalorder %s38, %s39
      %p50 = scmp.eq.s32.totalorder %s30, 0
      %p51 = por %p49, %p50
      %p52 = scmp.ne.s32.totalorder %s38, %s39
      %p53 = scmp.eq.s32.totalorder %s31, 1
      %p54 = por %p52, %p53
      %p56 = scmp.ne.s32.totalorder %s39, %s55
      %p57 = scmp.eq.s32.totalorder %s31, 0
      %p58 = por %p56, %p57
      %s59 = ssub.s32 %s25, %s32
      %p60 = scmp.eq.s32.totalorder %s59, 0
      %s62 = sadd.s32 %s61, 1
      %s63 = scalar_select %p60, %s61, %s62
      %p66 = pneg %p60
      %p67 = scmp.eq.s32.totalorder %s25, 1
      %p68 = por %p66, %p67
      %p69 = scmp.ne.s32.totalorder %s61, %s64
      %p70 = scmp.eq.s32.totalorder %s25, 0
      %p71 = por %p69, %p70
      %p72 = scmp.ne.s32.totalorder %s61, %s64
      %p73 = scmp.eq.s32.totalorder %s30, 1
      %p74 = por %p72, %p73
      %p75 = scmp.ne.s32.totalorder %s64, %s65
      %p76 = scmp.eq.s32.totalorder %s30, 0
      %p77 = por %p75, %p76
      %p78 = scmp.ne.s32.totalorder %s64, %s65
      %p79 = scmp.eq.s32.totalorder %s31, 1
      %p80 = por %p78, %p79
      %p82 = scmp.ne.s32.totalorder %s65, %s81
      %p83 = scmp.eq.s32.totalorder %s31, 0
      %p84 = por %p82, %p83
      %s85 = ssub.s32 %s25, %s32
      %p86 = scmp.eq.s32.totalorder %s85, 0
      %s88 = sadd.s32 %s87, 1
      %s89 = scalar_select %p86, %s87, %s88
      %p92 = pneg %p86
      %p93 = scmp.eq.s32.totalorder %s25, 1
      %p94 = por %p92, %p93
      %p95 = scmp.ne.s32.totalorder %s87, %s90
      %p96 = scmp.eq.s32.totalorder %s25, 0
      %p97 = por %p95, %p96
      %p98 = scmp.ne.s32.totalorder %s87, %s90
      %p99 = scmp.eq.s32.totalorder %s30, 1
      %p100 = por %p98, %p99
      %p101 = scmp.ne.s32.totalorder %s90, %s91
      %p102 = scmp.eq.s32.totalorder %s30, 0
      %p103 = por %p101, %p102
      %p104 = scmp.ne.s32.totalorder %s90, %s91
      %p105 = scmp.eq.s32.totalorder %s31, 1
      %p106 = por %p104, %p105
      %p108 = scmp.ne.s32.totalorder %s91, %s107
      %p109 = scmp.eq.s32.totalorder %s31, 0
      %p110 = por %p108, %p109
      %s112 = sadd.s32 %s111, 1
      %p115 = scmp.eq.s32.totalorder %s25, 1
      %p116 = scmp.ne.s32.totalorder %s111, %s113
      %p117 = scmp.eq.s32.totalorder %s25, 0
      %p118 = por %p116, %p117
      %p119 = scmp.ne.s32.totalorder %s111, %s113
      %p120 = scmp.eq.s32.totalorder %s30, 1
      %p121 = por %p119, %p120
      %p122 = scmp.ne.s32.totalorder %s113, %s114
      %p123 = scmp.eq.s32.totalorder %s30, 0
      %p124 = por %p122, %p123
      %p125 = scmp.ne.s32.totalorder %s113, %s114
      %p126 = scmp.eq.s32.totalorder %s31, 1
      %p127 = por %p125, %p126
      %p129 = scmp.ne.s32.totalorder %s114, %s128
      %p130 = scmp.eq.s32.totalorder %s31, 0
      %p131 = por %p129, %p130
      %s133 = sadd.s32 %s132, 1
      %p136 = scmp.eq.s32.totalorder %s25, 1
      %p137 = scmp.ne.s32.totalorder %s132, %s134
      %p138 = scmp.eq.s32.totalorder %s25, 0
      %p139 = por %p137, %p138
      %p140 = scmp.ne.s32.totalorder %s132, %s134
      %p141 = scmp.eq.s32.totalorder %s30, 1
      %p142 = por %p140, %p141
      %p143 = scmp.ne.s32.totalorder %s134, %s135
      %p144 = scmp.eq.s32.totalorder %s30, 0
      %p145 = por %p143, %p144
      %p146 = scmp.ne.s32.totalorder %s134, %s135
      %p147 = scmp.eq.s32.totalorder %s31, 1
      %p148 = por %p146, %p147
      %p150 = scmp.ne.s32.totalorder %s135, %s149
      %p151 = scmp.eq.s32.totalorder %s31, 0
      %p152 = por %p150, %p151
      %s154 = sadd.s32 %s153, 1
      %p157 = scmp.eq.s32.totalorder %s25, 1
      %p158 = scmp.ne.s32.totalorder %s153, %s155
      %p159 = scmp.eq.s32.totalorder %s25, 0
      %p160 = por %p158, %p159
      %p161 = scmp.ne.s32.totalorder %s153, %s155
      %p162 = scmp.eq.s32.totalorder %s30, 1
      %p163 = por %p161, %p162
      %p164 = scmp.ne.s32.totalorder %s155, %s156
      %p165 = scmp.eq.s32.totalorder %s30, 0
      %p166 = por %p164, %p165
      %p167 = scmp.ne.s32.totalorder %s155, %s156
      %p168 = scmp.eq.s32.totalorder %s31, 1
      %p169 = por %p167, %p168
      %p171 = scmp.ne.s32.totalorder %s156, %s170
      %p172 = scmp.eq.s32.totalorder %s31, 0
      %p173 = por %p171, %p172
      %s175 = sadd.s32 %s174, 1
      %p178 = scmp.eq.s32.totalorder %s25, 1
      %p179 = scmp.ne.s32.totalorder %s174, %s176
      %p180 = scmp.eq.s32.totalorder %s25, 0
      %p181 = por %p179, %p180
      %p182 = scmp.ne.s32.totalorder %s174, %s176
      %p183 = scmp.eq.s32.totalorder %s30, 1
      %p184 = por %p182, %p183
      %p185 = scmp.ne.s32.totalorder %s176, %s177
      %p186 = scmp.eq.s32.totalorder %s30, 0
      %p187 = por %p185, %p186
      %p188 = scmp.ne.s32.totalorder %s176, %s177
      %p189 = scmp.eq.s32.totalorder %s31, 1
      %p190 = por %p188, %p189
      %p192 = scmp.ne.s32.totalorder %s177, %s191
      %p193 = scmp.eq.s32.totalorder %s31, 0
      %p194 = por %p192, %p193
      %s196 = sadd.s32 %s195, 1
      %p199 = scmp.eq.s32.totalorder %s25, 1
      %p200 = scmp.ne.s32.totalorder %s195, %s197
      %p201 = scmp.eq.s32.totalorder %s25, 0
      %p202 = por %p200, %p201
      %p203 = scmp.ne.s32.totalorder %s195, %s197
      %p204 = scmp.eq.s32.totalorder %s30, 1
      %p205 = por %p203, %p204
      %p206 = scmp.ne.s32.totalorder %s197, %s198
      %p207 = scmp.eq.s32.totalorder %s30, 0
      %p208 = por %p206, %p207
      %p209 = scmp.ne.s32.totalorder %s197, %s198
      %p210 = scmp.eq.s32.totalorder %s31, 1
      %p211 = por %p209, %p210
      %p213 = scmp.ne.s32.totalorder %s198, %s212
      %p214 = scmp.eq.s32.totalorder %s31, 0
      %p215 = por %p213, %p214
      %s216 = ssub.s32 %s25, %s32
      %p217 = scmp.eq.s32.totalorder %s216, 0
      %s219 = sadd.s32 %s218, 1
      %s220 = scalar_select %p217, %s218, %s219
      %p223 = pneg %p217
      %p224 = scmp.eq.s32.totalorder %s25, 1
      %p225 = por %p223, %p224
      %p226 = scmp.ne.s32.totalorder %s218, %s221
      %p227 = scmp.eq.s32.totalorder %s25, 0
      %p228 = por %p226, %p227
      %p229 = scmp.ne.s32.totalorder %s218, %s221
      %p230 = scmp.eq.s32.totalorder %s30, 1
      %p231 = por %p229, %p230
      %p232 = scmp.ne.s32.totalorder %s221, %s222
      %p233 = scmp.eq.s32.totalorder %s30, 0
      %p234 = por %p232, %p233
      %p235 = scmp.ne.s32.totalorder %s221, %s222
      %p236 = scmp.eq.s32.totalorder %s31, 1
      %p237 = por %p235, %p236
      %p239 = scmp.ne.s32.totalorder %s222, %s238
      %p240 = scmp.eq.s32.totalorder %s31, 0
      %p241 = por %p239, %p240
      %p242 = scmp.le.s32.totalorder 1, %s25
      %p243 = scmp.lt.s32.totalorder %s25, 3
      %p244 = pnand %p242, %p243
      %p245 = pneg %p244
      // Predicated region
      $region9: #{tpu_custom_call.1} parent=5 // pred_check
        _
      $region10: #{tpu_custom_call.1} parent=5 // pred_check_branch
        %247 = sbr.rel (%p244) target = $region12
      $region11: #{tpu_custom_call.1} parent=5 // pred_region
        %s248 = ssub.s32 %s25, 1
        // Predicated region
        $region13: #{tpu_custom_call.1} parent=11 // pred_check
          %p249 = pneg %p124
        $region14: #{tpu_custom_call.1} parent=11 // pred_check_branch
          %251 = sbr.rel (%p249) target = $region16
        $region15: #{tpu_custom_call.1} parent=11 // pred_region
          %s253 = ssub.s32 512, 512
          %254 = vsyncadd [#allocation12], %s253
          %s255 = sshll.u32 [#allocation11], 4
          %s256 = int_to_ptr.vmem [resolvable:$true] %s255
          %261 = dma.hbm_to_vmem [thread:$0]  %s3, 512, %s256, [#allocation12], 128, 128, 8
        $region16: #{tpu_custom_call.1} parent=11 // pred_fallthru
          _
        // Predicated region
        $region17: #{tpu_custom_call.1} parent=11 // pred_check
          %p262 = pneg %p145
        $region18: #{tpu_custom_call.1} parent=11 // pred_check_branch
          %264 = sbr.rel (%p262) target = $region20
        $region19: #{tpu_custom_call.1} parent=11 // pred_region
          %s266 = ssub.s32 512, 512
          %267 = vsyncadd [#allocation12], %s266
          %s268 = sshll.u32 [#allocation13], 4
          %s269 = int_to_ptr.vmem [resolvable:$true] %s268
          %274 = dma.hbm_to_vmem [thread:$0]  %s4, 512, %s269, [#allocation12], 128, 128, 8
        $region20: #{tpu_custom_call.1} parent=11 // pred_fallthru
          _
        // Predicated region
        $region21: #{tpu_custom_call.1} parent=11 // pred_check
          %p275 = pneg %p166
        $region22: #{tpu_custom_call.1} parent=11 // pred_check_branch
          %277 = sbr.rel (%p275) target = $region24
        $region23: #{tpu_custom_call.1} parent=11 // pred_region
          %s279 = ssub.s32 512, 512
          %280 = vsyncadd [#allocation15], %s279
          %s281 = sshll.u32 [#allocation14], 4
          %s282 = int_to_ptr.vmem [resolvable:$true] %s281
          %287 = dma.hbm_to_vmem [thread:$0]  %s5, 512, %s282, [#allocation15], 128, 128, 8
        $region24: #{tpu_custom_call.1} parent=11 // pred_fallthru
          _
        // Predicated region
        $region25: #{tpu_custom_call.1} parent=11 // pred_check
          %p288 = pneg %p187
        $region26: #{tpu_custom_call.1} parent=11 // pred_check_branch
          %290 = sbr.rel (%p288) target = $region28
        $region27: #{tpu_custom_call.1} parent=11 // pred_region
          %s292 = ssub.s32 512, 512
          %293 = vsyncadd [#allocation15], %s292
          %s294 = sshll.u32 [#allocation16], 4
          %s295 = int_to_ptr.vmem [resolvable:$true] %s294
          %300 = dma.hbm_to_vmem [thread:$0]  %s6, 512, %s295, [#allocation15], 128, 128, 8
        $region28: #{tpu_custom_call.1} parent=11 // pred_fallthru
          _
        // Predicated region
        $region29: #{tpu_custom_call.1} parent=11 // pred_check
          %p301 = pneg %p208
        $region30: #{tpu_custom_call.1} parent=11 // pred_check_branch
          %303 = sbr.rel (%p301) target = $region32
        $region31: #{tpu_custom_call.1} parent=11 // pred_region
          _
        $region32: #{tpu_custom_call.1} parent=11 // pred_fallthru
          _
      $region12: #{tpu_custom_call.1} parent=5 // pred_fallthru
        _
      %p304 = scmp.lt.s32.totalorder %s25, 2
      // Predicated region
      $region33: #{tpu_custom_call.1} parent=5 // pred_check
        %p305 = pneg %p304
      $region34: #{tpu_custom_call.1} parent=5 // pred_check_branch
        %307 = sbr.rel (%p305) target = $region36
      $region35: #{tpu_custom_call.1} parent=5 // pred_region
        // Predicated region
        $region37: #{tpu_custom_call.1} parent=35 // pred_check
          %p308 = pneg %p45
        $region38: #{tpu_custom_call.1} parent=35 // pred_check_branch
          %310 = sbr.rel (%p308) target = $region40
        $region39: #{tpu_custom_call.1} parent=35 // pred_region
          %s311 = sand.u32 %s35, 1
          %s312 = scalar_lea.sflag [#allocation6], %s311
          %s313 = sand.u32 %s35, 1
          %s314 = smul.addr %s313, 8
          %s315 = scalar_lea.vmem [#allocation5], %s314
          %s317 = ssub.s32 128, 128
          %318 = vsyncadd %s312, %s317
          %s319 = smul.addr %s25, 128
          %s320 = scalar_lea.hbm %s0, %s319
          %s322 = sshll.u32 %s315, 4
          %s323 = int_to_ptr.vmem [resolvable:$true] %s322
          %325 = dma.hbm_to_vmem [thread:$0]  %s320, 128, %s323, %s312
        $region40: #{tpu_custom_call.1} parent=35 // pred_fallthru
          _
        // Predicated region
        $region41: #{tpu_custom_call.1} parent=35 // pred_check
          %p326 = pneg %p71
        $region42: #{tpu_custom_call.1} parent=35 // pred_check_branch
          %328 = sbr.rel (%p326) target = $region44
        $region43: #{tpu_custom_call.1} parent=35 // pred_region
          %s329 = sand.u32 %s25, 1
          %s330 = scalar_lea.sflag [#allocation9], %s329
          %s331 = sand.u32 %s61, 1
          %s332 = smul.addr %s331, 8
          %s333 = scalar_lea.vmem [#allocation8], %s332
          %s335 = ssub.s32 128, 128
          %336 = vsyncadd %s330, %s335
          %s337 = smul.addr %s25, 128
          %s338 = scalar_lea.hbm %s1, %s337
          %s340 = sshll.u32 %s333, 4
          %s341 = int_to_ptr.vmem [resolvable:$true] %s340
          %343 = dma.hbm_to_vmem [thread:$0]  %s338, 128, %s341, %s330
        $region44: #{tpu_custom_call.1} parent=35 // pred_fallthru
          _
        // Predicated region
        $region45: #{tpu_custom_call.1} parent=35 // pred_check
          %p344 = pneg %p97
        $region46: #{tpu_custom_call.1} parent=35 // pred_check_branch
          %346 = sbr.rel (%p344) target = $region48
        $region47: #{tpu_custom_call.1} parent=35 // pred_region
          %s347 = sand.u32 %s25, 1
          %s348 = scalar_lea.sflag [#allocation9], %s347
          %s349 = sand.u32 %s87, 1
          %s350 = smul.addr %s349, 8
          %s351 = scalar_lea.vmem [#allocation10], %s350
          %s353 = ssub.s32 128, 128
          %354 = vsyncadd %s348, %s353
          %s355 = smul.addr %s25, 128
          %s356 = scalar_lea.hbm %s2, %s355
          %s358 = sshll.u32 %s351, 4
          %s359 = int_to_ptr.vmem [resolvable:$true] %s358
          %361 = dma.hbm_to_vmem [thread:$0]  %s356, 128, %s359, %s348
        $region48: #{tpu_custom_call.1} parent=35 // pred_fallthru
          _
      $region36: #{tpu_custom_call.1} parent=5 // pred_fallthru
        _
      %p362 = scmp.le.s32.totalorder 1, %s25
      %p363 = scmp.lt.s32.totalorder %s25, 3
      %p364 = pnand %p362, %p363
      %p365 = pneg %p364
      // Predicated region
      $region49: #{tpu_custom_call.1} parent=5 // pred_check
        _
      $region50: #{tpu_custom_call.1} parent=5 // pred_check_branch
        %367 = sbr.rel (%p364) target = $region52
      $region51: #{tpu_custom_call.1} parent=5 // pred_region
        %s368 = ssub.s32 %s25, 1
        %s369 = sand.u32 %s38, 1
        %s370 = scalar_lea.sflag [#allocation6], %s369
        %s371 = sand.u32 %s38, 1
        %s372 = smul.addr %s371, 8
        %s373 = scalar_lea.vmem [#allocation5], %s372
        // Predicated region
        $region53: #{tpu_custom_call.1} parent=51 // pred_check
          %p374 = pneg %p51
        $region54: #{tpu_custom_call.1} parent=51 // pred_check_branch
          %376 = sbr.rel (%p374) target = $region56
        $region55: #{tpu_custom_call.1} parent=51 // pred_region
          %377 = dma.done %s370, 128
        $region56: #{tpu_custom_call.1} parent=51 // pred_fallthru
          _
        %s378 = sand.u32 %s30, 1
        %s379 = scalar_lea.sflag [#allocation9], %s378
        %s380 = sand.u32 %s64, 1
        %s381 = smul.addr %s380, 8
        %s382 = scalar_lea.vmem [#allocation8], %s381
        // Predicated region
        $region57: #{tpu_custom_call.1} parent=51 // pred_check
          %p383 = pneg %p77
        $region58: #{tpu_custom_call.1} parent=51 // pred_check_branch
          %385 = sbr.rel (%p383) target = $region60
        $region59: #{tpu_custom_call.1} parent=51 // pred_region
          %386 = dma.done %s379, 128
        $region60: #{tpu_custom_call.1} parent=51 // pred_fallthru
          _
        %s387 = sand.u32 %s30, 1
        %s388 = scalar_lea.sflag [#allocation9], %s387
        %s389 = sand.u32 %s90, 1
        %s390 = smul.addr %s389, 8
        %s391 = scalar_lea.vmem [#allocation10], %s390
        // Predicated region
        $region61: #{tpu_custom_call.1} parent=51 // pred_check
          %p392 = pneg %p103
        $region62: #{tpu_custom_call.1} parent=51 // pred_check_branch
          %394 = sbr.rel (%p392) target = $region64
        $region63: #{tpu_custom_call.1} parent=51 // pred_region
          %395 = dma.done %s388, 128
        $region64: #{tpu_custom_call.1} parent=51 // pred_fallthru
          _
        // Predicated region
        $region65: #{tpu_custom_call.1} parent=51 // pred_check
          %p396 = pneg %p124
        $region66: #{tpu_custom_call.1} parent=51 // pred_check_branch
          %398 = sbr.rel (%p396) target = $region68
        $region67: #{tpu_custom_call.1} parent=51 // pred_region
          %399 = dma.done [#allocation12], 512
        $region68: #{tpu_custom_call.1} parent=51 // pred_fallthru
          _
        // Predicated region
        $region69: #{tpu_custom_call.1} parent=51 // pred_check
          %p400 = pneg %p145
        $region70: #{tpu_custom_call.1} parent=51 // pred_check_branch
          %402 = sbr.rel (%p400) target = $region72
        $region71: #{tpu_custom_call.1} parent=51 // pred_region
          %403 = dma.done [#allocation12], 512
        $region72: #{tpu_custom_call.1} parent=51 // pred_fallthru
          _
        // Predicated region
        $region73: #{tpu_custom_call.1} parent=51 // pred_check
          %p404 = pneg %p166
        $region74: #{tpu_custom_call.1} parent=51 // pred_check_branch
          %406 = sbr.rel (%p404) target = $region76
        $region75: #{tpu_custom_call.1} parent=51 // pred_region
          %407 = dma.done [#allocation15], 512
        $region76: #{tpu_custom_call.1} parent=51 // pred_fallthru
          _
        // Predicated region
        $region77: #{tpu_custom_call.1} parent=51 // pred_check
          %p408 = pneg %p187
        $region78: #{tpu_custom_call.1} parent=51 // pred_check_branch
          %410 = sbr.rel (%p408) target = $region80
        $region79: #{tpu_custom_call.1} parent=51 // pred_region
          %411 = dma.done [#allocation15], 512
        $region80: #{tpu_custom_call.1} parent=51 // pred_fallthru
          _
        %s412 = sand.u32 %s38, 1
        %s413 = scalar_lea.sflag [#allocation6], %s412
        %s414 = sand.u32 %s38, 1
        %s415 = smul.addr %s414, 8
        %s416 = scalar_lea.vmem [#allocation5], %s415
        %p417 = pneg %p51
        %p418 = pneg %p48
        %s419 = sand.u32 %s30, 1
        %s420 = scalar_lea.sflag [#allocation9], %s419
        %s421 = sand.u32 %s64, 1
        %s422 = smul.addr %s421, 8
        %s423 = scalar_lea.vmem [#allocation8], %s422
        %p424 = pneg %p77
        %p425 = pneg %p74
        %s426 = sand.u32 %s30, 1
        %s427 = scalar_lea.sflag [#allocation9], %s426
        %s428 = sand.u32 %s90, 1
        %s429 = smul.addr %s428, 8
        %s430 = scalar_lea.vmem [#allocation10], %s429
        %p431 = pneg %p103
        %p432 = pneg %p100
        %p433 = pneg %p124
        %p434 = pneg %p121
        %p435 = pneg %p145
        %p436 = pneg %p142
        %p437 = pneg %p166
        %p438 = pneg %p163
        %p439 = pneg %p187
        %p440 = pneg %p184
        %p441 = pneg %p208
        %p442 = pneg %p205
        %p443 = pneg %p234
        %p444 = pneg %p231
        %s445 = sand.u32 %s221, 1
        %s446 = scalar_lea.sflag [#allocation7], %s445
        %s447 = sand.u32 %s221, 1
        %s448 = smul.addr %s447, 8
        %s449 = scalar_lea.vmem [#allocation17], %s448
        %v450 = vld [vmem:[%s373] sm:$0xff]
        %v451 = vld [vmem:[%s382] sm:$0xff]
        %v452 = vld [vmem:[%s391] sm:$0xff]
        %v453 = vld [vmem:[#allocation11] sm:$0xff]
        %v454 = vld [vmem:[#allocation11 + $0x8] sm:$0xff]
        %v455 = vld [vmem:[#allocation11 + $0x10] sm:$0xff]
        %v456 = vld [vmem:[#allocation11 + $0x18] sm:$0xff]
        %vm457 = vcmask 261120
        %v459 = vsel %vm457, %v450, 0
        %461 = vmatprep.subr.mxu0 0.0
        %462 = vmatpush1.msra.mxu0 0.0
        %463 = vmatprep.subr.mxu0 0.0
        %464 = vmatpush1.msra.mxu0 0.0
        %465 = vmatprep.subr.mxu0 0.0
        %466 = vmatpush1.msra.mxu0 0.0
        %467 = vmatprep.subr.mxu0 0.0
        %468 = vmatpush1.msra.mxu0 0.0
        %469 = vmatprep.subr.mxu0 0.0
        %470 = vmatpush1.msra.mxu0 0.0
        %471 = vmatprep.subr.mxu0 0.0
        %472 = vmatpush1.msra.mxu0 0.0
        %473 = vmatprep.subr.mxu0 0.0
        %474 = vmatpush1.msra.mxu0 0.0
        %475 = vmatprep.subr.mxu0 0.0
        %476 = vmatpush1.msra.mxu0 0.0
        %477 = vmatprep.subr.mxu0 0.0
        %478 = vmatpush1.msra.mxu0 0.0
        %479 = vmatprep.subr.mxu0 0.0
        %480 = vmatpush1.msra.mxu0 0.0
        %481 = vmatprep.subr.mxu0 0.0
        %482 = vmatpush1.msra.mxu0 0.0
        %483 = vmatprep.subr.mxu0 0.0
        %484 = vmatpush1.msra.mxu0 0.0
        %485 = vmatprep.subr.mxu0 0.0
        %486 = vmatpush1.msra.mxu0 %v456
        %487 = vmatprep.subr.mxu0 0.0
        %488 = vmatpush1.msra.mxu0 %v455
        %489 = vmatprep.subr.mxu0 0.0
        %490 = vmatpush1.msra.mxu0 %v454
        %491 = vmatprep.subr.mxu0 0.0
        %492 = vmatpush1.msra.mxu0 %v453
        %493 = vmatprep.subr.mxu0 0.0
        %494 = vmatpush2.msra.mxu0 0.0
        %495 = vmatprep.subr.mxu0 0.0
        %496 = vmatpush2.msra.mxu0 0.0
        %497 = vmatprep.subr.mxu0 0.0
        %498 = vmatpush2.msra.mxu0 0.0
        %499 = vmatprep.subr.mxu0 0.0
        %500 = vmatpush2.msra.mxu0 0.0
        %501 = vmatprep.subr.mxu0 0.0
        %502 = vmatpush2.msra.mxu0 0.0
        %503 = vmatprep.subr.mxu0 0.0
        %504 = vmatpush2.msra.mxu0 0.0
        %505 = vmatprep.subr.mxu0 0.0
        %506 = vmatpush2.msra.mxu0 0.0
        %507 = vmatprep.subr.mxu0 0.0
        %508 = vmatpush2.msra.mxu0 0.0
        %509 = vmatprep.subr.mxu0 0.0
        %510 = vmatpush2.msra.mxu0 0.0
        %511 = vmatprep.subr.mxu0 0.0
        %512 = vmatpush2.msra.mxu0 0.0
        %513 = vmatprep.subr.mxu0 0.0
        %514 = vmatpush2.msra.mxu0 0.0
        %515 = vmatprep.subr.mxu0 0.0
        %516 = vmatpush2.msra.mxu0 0.0
        %517 = vmatprep.subr.mxu0 0.0
        %518 = vmatpush2.msra.mxu0 0.0
        %519 = vmatprep.subr.mxu0 0.0
        %520 = vmatpush2.msra.mxu0 0.0
        %521 = vmatprep.subr.mxu0 0.0
        %522 = vmatpush2.msra.mxu0 0.0
        %523 = vmatprep.subr.mxu0 0.0
        %524 = vmatpush2.msra.mxu0 0.0
        %525 = vmatprep.mubr.f32.mxu0 0.0
        %526 = vmatmul.mubr.f32.gmra.mxu0 %v459
        %v527 = vpop.f32.mrf.mxu0
        %v528 = vadd.f32 0.0, %v527
        %v529 = vpop.f32.mrf.mxu0
        %530 = vdwg.mxu0
        %v531 = vld [vmem:[#allocation13] sm:$0xff]
        %v532 = vld [vmem:[#allocation13 + $0x8] sm:$0xff]
        %v533 = vld [vmem:[#allocation13 + $0x10] sm:$0xff]
        %v534 = vld [vmem:[#allocation13 + $0x18] sm:$0xff]
        %v536 = vsel %vm457, %v451, 0
        %538 = vmatprep.subr.mxu0 0.0
        %539 = vmatpush1.msra.mxu0 0.0
        %540 = vmatprep.subr.mxu0 0.0
        %541 = vmatpush1.msra.mxu0 0.0
        %542 = vmatprep.subr.mxu0 0.0
        %543 = vmatpush1.msra.mxu0 0.0
        %544 = vmatprep.subr.mxu0 0.0
        %545 = vmatpush1.msra.mxu0 0.0
        %546 = vmatprep.subr.mxu0 0.0
        %547 = vmatpush1.msra.mxu0 0.0
        %548 = vmatprep.subr.mxu0 0.0
        %549 = vmatpush1.msra.mxu0 0.0
        %550 = vmatprep.subr.mxu0 0.0
        %551 = vmatpush1.msra.mxu0 0.0
        %552 = vmatprep.subr.mxu0 0.0
        %553 = vmatpush1.msra.mxu0 0.0
        %554 = vmatprep.subr.mxu0 0.0
        %555 = vmatpush1.msra.mxu0 0.0
        %556 = vmatprep.subr.mxu0 0.0
        %557 = vmatpush1.msra.mxu0 0.0
        %558 = vmatprep.subr.mxu0 0.0
        %559 = vmatpush1.msra.mxu0 0.0
        %560 = vmatprep.subr.mxu0 0.0
        %561 = vmatpush1.msra.mxu0 0.0
        %562 = vmatprep.subr.mxu0 0.0
        %563 = vmatpush1.msra.mxu0 %v534
        %564 = vmatprep.subr.mxu0 0.0
        %565 = vmatpush1.msra.mxu0 %v533
        %566 = vmatprep.subr.mxu0 0.0
        %567 = vmatpush1.msra.mxu0 %v532
        %568 = vmatprep.subr.mxu0 0.0
        %569 = vmatpush1.msra.mxu0 %v531
        %570 = vmatprep.subr.mxu0 0.0
        %571 = vmatpush2.msra.mxu0 0.0
        %572 = vmatprep.subr.mxu0 0.0
        %573 = vmatpush2.msra.mxu0 0.0
        %574 = vmatprep.subr.mxu0 0.0
        %575 = vmatpush2.msra.mxu0 0.0
        %576 = vmatprep.subr.mxu0 0.0
        %577 = vmatpush2.msra.mxu0 0.0
        %578 = vmatprep.subr.mxu0 0.0
        %579 = vmatpush2.msra.mxu0 0.0
        %580 = vmatprep.subr.mxu0 0.0
        %581 = vmatpush2.msra.mxu0 0.0
        %582 = vmatprep.subr.mxu0 0.0
        %583 = vmatpush2.msra.mxu0 0.0
        %584 = vmatprep.subr.mxu0 0.0
        %585 = vmatpush2.msra.mxu0 0.0
        %586 = vmatprep.subr.mxu0 0.0
        %587 = vmatpush2.msra.mxu0 0.0
        %588 = vmatprep.subr.mxu0 0.0
        %589 = vmatpush2.msra.mxu0 0.0
        %590 = vmatprep.subr.mxu0 0.0
        %591 = vmatpush2.msra.mxu0 0.0
        %592 = vmatprep.subr.mxu0 0.0
        %593 = vmatpush2.msra.mxu0 0.0
        %594 = vmatprep.subr.mxu0 0.0
        %595 = vmatpush2.msra.mxu0 0.0
        %596 = vmatprep.subr.mxu0 0.0
        %597 = vmatpush2.msra.mxu0 0.0
        %598 = vmatprep.subr.mxu0 0.0
        %599 = vmatpush2.msra.mxu0 0.0
        %600 = vmatprep.subr.mxu0 0.0
        %601 = vmatpush2.msra.mxu0 0.0
        %602 = vmatprep.mubr.f32.mxu0 0.0
        %603 = vmatmul.mubr.f32.gmra.mxu0 %v536
        %v604 = vpop.f32.mrf.mxu0
        %v605 = vadd.f32 0.0, %v604
        %v606 = vpop.f32.mrf.mxu0
        %607 = vdwg.mxu0
        %608 = vst.msk [vmem:[#allocation3] sm:$0xff] %vm457, %v605
        %v609 = vld [vmem:[#allocation14] sm:$0xff]
        %v610 = vld [vmem:[#allocation14 + $0x8] sm:$0xff]
        %v611 = vld [vmem:[#allocation14 + $0x10] sm:$0xff]
        %v612 = vld [vmem:[#allocation14 + $0x18] sm:$0xff]
        %v614 = vsel %vm457, %v452, 0
        %616 = vmatprep.subr.mxu0 0.0
        %617 = vmatpush1.msra.mxu0 0.0
        %618 = vmatprep.subr.mxu0 0.0
        %619 = vmatpush1.msra.mxu0 0.0
        %620 = vmatprep.subr.mxu0 0.0
        %621 = vmatpush1.msra.mxu0 0.0
        %622 = vmatprep.subr.mxu0 0.0
        %623 = vmatpush1.msra.mxu0 0.0
        %624 = vmatprep.subr.mxu0 0.0
        %625 = vmatpush1.msra.mxu0 0.0
        %626 = vmatprep.subr.mxu0 0.0
        %627 = vmatpush1.msra.mxu0 0.0
        %628 = vmatprep.subr.mxu0 0.0
        %629 = vmatpush1.msra.mxu0 0.0
        %630 = vmatprep.subr.mxu0 0.0
        %631 = vmatpush1.msra.mxu0 0.0
        %632 = vmatprep.subr.mxu0 0.0
        %633 = vmatpush1.msra.mxu0 0.0
        %634 = vmatprep.subr.mxu0 0.0
        %635 = vmatpush1.msra.mxu0 0.0
        %636 = vmatprep.subr.mxu0 0.0
        %637 = vmatpush1.msra.mxu0 0.0
        %638 = vmatprep.subr.mxu0 0.0
        %639 = vmatpush1.msra.mxu0 0.0
        %640 = vmatprep.subr.mxu0 0.0
        %641 = vmatpush1.msra.mxu0 %v612
        %642 = vmatprep.subr.mxu0 0.0
        %643 = vmatpush1.msra.mxu0 %v611
        %644 = vmatprep.subr.mxu0 0.0
        %645 = vmatpush1.msra.mxu0 %v610
        %646 = vmatprep.subr.mxu0 0.0
        %647 = vmatpush1.msra.mxu0 %v609
        %648 = vmatprep.subr.mxu0 0.0
        %649 = vmatpush2.msra.mxu0 0.0
        %650 = vmatprep.subr.mxu0 0.0
        %651 = vmatpush2.msra.mxu0 0.0
        %652 = vmatprep.subr.mxu0 0.0
        %653 = vmatpush2.msra.mxu0 0.0
        %654 = vmatprep.subr.mxu0 0.0
        %655 = vmatpush2.msra.mxu0 0.0
        %656 = vmatprep.subr.mxu0 0.0
        %657 = vmatpush2.msra.mxu0 0.0
        %658 = vmatprep.subr.mxu0 0.0
        %659 = vmatpush2.msra.mxu0 0.0
        %660 = vmatprep.subr.mxu0 0.0
        %661 = vmatpush2.msra.mxu0 0.0
        %662 = vmatprep.subr.mxu0 0.0
        %663 = vmatpush2.msra.mxu0 0.0
        %664 = vmatprep.subr.mxu0 0.0
        %665 = vmatpush2.msra.mxu0 0.0
        %666 = vmatprep.subr.mxu0 0.0
        %667 = vmatpush2.msra.mxu0 0.0
        %668 = vmatprep.subr.mxu0 0.0
        %669 = vmatpush2.msra.mxu0 0.0
        %670 = vmatprep.subr.mxu0 0.0
        %671 = vmatpush2.msra.mxu0 0.0
        %672 = vmatprep.subr.mxu0 0.0
        %673 = vmatpush2.msra.mxu0 0.0
        %674 = vmatprep.subr.mxu0 0.0
        %675 = vmatpush2.msra.mxu0 0.0
        %676 = vmatprep.subr.mxu0 0.0
        %677 = vmatpush2.msra.mxu0 0.0
        %678 = vmatprep.subr.mxu0 0.0
        %679 = vmatpush2.msra.mxu0 0.0
        %680 = vmatprep.mubr.f32.mxu0 0.0
        %681 = vmatmul.mubr.f32.gmra.mxu0 %v614
        %v682 = vpop.f32.mrf.mxu0
        %v683 = vadd.f32 0.0, %v682
        %v684 = vpop.f32.mrf.mxu0
        %685 = vdwg.mxu0
        %686 = vst.msk [vmem:[#allocation2] sm:$0xff] %vm457, %v683
        %v687 = vlaneseq
        %v688 = vshrl.u32 %v687, 7
        %v689 = vlaneseq
        %v690 = vand.u32 %v689, 127
        %vm691 = vcmp.gt.s32.totalorder %v688, %v690
        %v692 = vld [vmem:[#allocation2] sm:$0xff]
        %v693 = vld [vmem:[#allocation3] sm:$0xff]
        %vm694 = vcmask 64512
        %v696 = vsel %vm694, %v693, 0
        %v699 = vsel %vm694, %v692, 0
        %701 = vmatprep.subr.mxu0 0.0
        %702 = vmatpush1.xpose.msra.mxu0 0.0
        %703 = vmatprep.subr.mxu0 0.0
        %704 = vmatpush1.xpose.msra.mxu0 0.0
        %705 = vmatprep.subr.mxu0 0.0
        %706 = vmatpush1.xpose.msra.mxu0 0.0
        %707 = vmatprep.subr.mxu0 0.0
        %708 = vmatpush1.xpose.msra.mxu0 0.0
        %709 = vmatprep.subr.mxu0 0.0
        %710 = vmatpush1.xpose.msra.mxu0 0.0
        %711 = vmatprep.subr.mxu0 0.0
        %712 = vmatpush1.xpose.msra.mxu0 0.0
        %713 = vmatprep.subr.mxu0 0.0
        %714 = vmatpush1.xpose.msra.mxu0 0.0
        %715 = vmatprep.subr.mxu0 0.0
        %716 = vmatpush1.xpose.msra.mxu0 0.0
        %717 = vmatprep.subr.mxu0 0.0
        %718 = vmatpush1.xpose.msra.mxu0 0.0
        %719 = vmatprep.subr.mxu0 0.0
        %720 = vmatpush1.xpose.msra.mxu0 0.0
        %721 = vmatprep.subr.mxu0 0.0
        %722 = vmatpush1.xpose.msra.mxu0 0.0
        %723 = vmatprep.subr.mxu0 0.0
        %724 = vmatpush1.xpose.msra.mxu0 0.0
        %725 = vmatprep.subr.mxu0 0.0
        %726 = vmatpush1.xpose.msra.mxu0 0.0
        %727 = vmatprep.subr.mxu0 0.0
        %728 = vmatpush1.xpose.msra.mxu0 0.0
        %729 = vmatprep.subr.mxu0 0.0
        %730 = vmatpush1.xpose.msra.mxu0 0.0
        %731 = vmatprep.subr.mxu0 0.0
        %732 = vmatpush1.xpose.msra.mxu0 %v699
        %733 = vmatprep.subr.mxu0 0.0
        %734 = vmatpush2.xpose.msra.mxu0 0.0
        %735 = vmatprep.subr.mxu0 0.0
        %736 = vmatpush2.xpose.msra.mxu0 0.0
        %737 = vmatprep.subr.mxu0 0.0
        %738 = vmatpush2.xpose.msra.mxu0 0.0
        %739 = vmatprep.subr.mxu0 0.0
        %740 = vmatpush2.xpose.msra.mxu0 0.0
        %741 = vmatprep.subr.mxu0 0.0
        %742 = vmatpush2.xpose.msra.mxu0 0.0
        %743 = vmatprep.subr.mxu0 0.0
        %744 = vmatpush2.xpose.msra.mxu0 0.0
        %745 = vmatprep.subr.mxu0 0.0
        %746 = vmatpush2.xpose.msra.mxu0 0.0
        %747 = vmatprep.subr.mxu0 0.0
        %748 = vmatpush2.xpose.msra.mxu0 0.0
        %749 = vmatprep.subr.mxu0 0.0
        %750 = vmatpush2.xpose.msra.mxu0 0.0
        %751 = vmatprep.subr.mxu0 0.0
        %752 = vmatpush2.xpose.msra.mxu0 0.0
        %753 = vmatprep.subr.mxu0 0.0
        %754 = vmatpush2.xpose.msra.mxu0 0.0
        %755 = vmatprep.subr.mxu0 0.0
        %756 = vmatpush2.xpose.msra.mxu0 0.0
        %757 = vmatprep.subr.mxu0 0.0
        %758 = vmatpush2.xpose.msra.mxu0 0.0
        %759 = vmatprep.subr.mxu0 0.0
        %760 = vmatpush2.xpose.msra.mxu0 0.0
        %761 = vmatprep.subr.mxu0 0.0
        %762 = vmatpush2.xpose.msra.mxu0 0.0
        %763 = vmatprep.subr.mxu0 0.0
        %764 = vmatpush2.xpose.msra.mxu0 0.0
        %765 = vmatprep.mubr.f32.mxu0 0.0
        %766 = vmatmul.mubr.f32.gmra.mxu0 %v696
        %v767 = vpop.f32.mrf.mxu0
        %v768 = vadd.f32 0.0, %v767
        %v769 = vpop.f32.mrf.mxu0
        %770 = vdwg.mxu0
        %v771 = vsel %vm691, -1e+28, %v768
        %v772 = vsel %vm694, %v771, -inf
        %v773 = vrot.slane %v772, 4
        %v774 = vmax.f32 %v772, %v773
        %v775 = vrot.slane %v774, 2
        %v776 = vmax.f32 %v774, %v775
        %v777 = vrot.slane %v776, 1
        %v778 = vmax.f32 %v776, %v777
        %v779 = vsub.f32 %v771, %v778
        %v780 = vmul.f32 %v779, 1.442695
        %v781 = vpow.pop %v780
        %v782 = vsel %vm694, %v781, 0.0
        %v783 = vrot.slane %v782, 4
        %v784 = vadd.f32 %v782, %v783
        %v785 = vrot.slane %v784, 2
        %v786 = vadd.f32 %v784, %v785
        %v787 = vrot.slane %v786, 1
        %v788 = vadd.f32 %v786, %v787
        %v789 = vrcp.pop %v788
        %v790 = vmul.f32 %v788, %v789
        %v791 = vsub.f32 2.0, %v790
        %v792 = vmul.f32 %v789, %v791
        %v793 = vmul.f32 %v781, %v792
        %v794 = vsel %vm694, %v793, 0.0
        %795 = vadd.xlane.f32.xlu0 %v794
        %v796 = vpop.xlane.xlu0 %795
        %797 = vst.msk [vmem:[#allocation4] sm:$0xff] %vm694, %v796
        %v798 = vld [vmem:[#allocation2] sm:$0xff]
        %v799 = vld [vmem:[#allocation3] sm:$0xff]
        %801 = vrot.lane.b32.xlu0 %v799, 120
        %v802 = vpop.permute.xlu0 %801
        %804 = vrot.lane.b32.xlu0 %v798, 120
        %v805 = vpop.permute.xlu0 %804
        %v806 = vsel %vm694, %v802, 0
        %v808 = vsel %vm694, %v805, 0
        %810 = vmatprep.subr.mxu0 0.0
        %811 = vmatpush1.xpose.msra.mxu0 0.0
        %812 = vmatprep.subr.mxu0 0.0
        %813 = vmatpush1.xpose.msra.mxu0 0.0
        %814 = vmatprep.subr.mxu0 0.0
        %815 = vmatpush1.xpose.msra.mxu0 0.0
        %816 = vmatprep.subr.mxu0 0.0
        %817 = vmatpush1.xpose.msra.mxu0 0.0
        %818 = vmatprep.subr.mxu0 0.0
        %819 = vmatpush1.xpose.msra.mxu0 0.0
        %820 = vmatprep.subr.mxu0 0.0
        %821 = vmatpush1.xpose.msra.mxu0 0.0
        %822 = vmatprep.subr.mxu0 0.0
        %823 = vmatpush1.xpose.msra.mxu0 0.0
        %824 = vmatprep.subr.mxu0 0.0
        %825 = vmatpush1.xpose.msra.mxu0 0.0
        %826 = vmatprep.subr.mxu0 0.0
        %827 = vmatpush1.xpose.msra.mxu0 0.0
        %828 = vmatprep.subr.mxu0 0.0
        %829 = vmatpush1.xpose.msra.mxu0 0.0
        %830 = vmatprep.subr.mxu0 0.0
        %831 = vmatpush1.xpose.msra.mxu0 0.0
        %832 = vmatprep.subr.mxu0 0.0
        %833 = vmatpush1.xpose.msra.mxu0 0.0
        %834 = vmatprep.subr.mxu0 0.0
        %835 = vmatpush1.xpose.msra.mxu0 0.0
        %836 = vmatprep.subr.mxu0 0.0
        %837 = vmatpush1.xpose.msra.mxu0 0.0
        %838 = vmatprep.subr.mxu0 0.0
        %839 = vmatpush1.xpose.msra.mxu0 0.0
        %840 = vmatprep.subr.mxu0 0.0
        %841 = vmatpush1.xpose.msra.mxu0 %v808
        %842 = vmatprep.subr.mxu0 0.0
        %843 = vmatpush2.xpose.msra.mxu0 0.0
        %844 = vmatprep.subr.mxu0 0.0
        %845 = vmatpush2.xpose.msra.mxu0 0.0
        %846 = vmatprep.subr.mxu0 0.0
        %847 = vmatpush2.xpose.msra.mxu0 0.0
        %848 = vmatprep.subr.mxu0 0.0
        %849 = vmatpush2.xpose.msra.mxu0 0.0
        %850 = vmatprep.subr.mxu0 0.0
        %851 = vmatpush2.xpose.msra.mxu0 0.0
        %852 = vmatprep.subr.mxu0 0.0
        %853 = vmatpush2.xpose.msra.mxu0 0.0
        %854 = vmatprep.subr.mxu0 0.0
        %855 = vmatpush2.xpose.msra.mxu0 0.0
        %856 = vmatprep.subr.mxu0 0.0
        %857 = vmatpush2.xpose.msra.mxu0 0.0
        %858 = vmatprep.subr.mxu0 0.0
        %859 = vmatpush2.xpose.msra.mxu0 0.0
        %860 = vmatprep.subr.mxu0 0.0
        %861 = vmatpush2.xpose.msra.mxu0 0.0
        %862 = vmatprep.subr.mxu0 0.0
        %863 = vmatpush2.xpose.msra.mxu0 0.0
        %864 = vmatprep.subr.mxu0 0.0
        %865 = vmatpush2.xpose.msra.mxu0 0.0
        %866 = vmatprep.subr.mxu0 0.0
        %867 = vmatpush2.xpose.msra.mxu0 0.0
        %868 = vmatprep.subr.mxu0 0.0
        %869 = vmatpush2.xpose.msra.mxu0 0.0
        %870 = vmatprep.subr.mxu0 0.0
        %871 = vmatpush2.xpose.msra.mxu0 0.0
        %872 = vmatprep.subr.mxu0 0.0
        %873 = vmatpush2.xpose.msra.mxu0 0.0
        %874 = vmatprep.mubr.f32.mxu0 0.0
        %875 = vmatmul.mubr.f32.gmra.mxu0 %v806
        %v876 = vpop.f32.mrf.mxu0
        %v877 = vadd.f32 0.0, %v876
        %v878 = vpop.f32.mrf.mxu0
        %879 = vdwg.mxu0
        %v880 = vsel %vm691, -1e+28, %v877
        %v881 = vsel %vm694, %v880, -inf
        %v882 = vrot.slane %v881, 4
        %v883 = vmax.f32 %v881, %v882
        %v884 = vrot.slane %v883, 2
        %v885 = vmax.f32 %v883, %v884
        %v886 = vrot.slane %v885, 1
        %v887 = vmax.f32 %v885, %v886
        %v888 = vsub.f32 %v880, %v887
        %v889 = vmul.f32 %v888, 1.442695
        %v890 = vpow.pop %v889
        %v891 = vsel %vm694, %v890, 0.0
        %v892 = vrot.slane %v891, 4
        %v893 = vadd.f32 %v891, %v892
        %v894 = vrot.slane %v893, 2
        %v895 = vadd.f32 %v893, %v894
        %v896 = vrot.slane %v895, 1
        %v897 = vadd.f32 %v895, %v896
        %v898 = vrcp.pop %v897
        %v899 = vmul.f32 %v897, %v898
        %v900 = vsub.f32 2.0, %v899
        %v901 = vmul.f32 %v898, %v900
        %v902 = vmul.f32 %v890, %v901
        %v903 = vsel %vm694, %v902, 0.0
        %904 = vadd.xlane.f32.xlu0 %v903
        %v905 = vpop.xlane.xlu0 %904
        %vm906 = vcmask 130112
        %907 = vst.msk [vmem:[#allocation4] sm:$0xff] %vm906, %v905
        %v908 = vld [vmem:[#allocation2] sm:$0xff]
        %v909 = vld [vmem:[#allocation3] sm:$0xff]
        %911 = vrot.lane.b32.xlu0 %v909, 112
        %v912 = vpop.permute.xlu0 %911
        %914 = vrot.lane.b32.xlu0 %v908, 112
        %v915 = vpop.permute.xlu0 %914
        %v916 = vsel %vm694, %v912, 0
        %v918 = vsel %vm694, %v915, 0
        %920 = vmatprep.subr.mxu0 0.0
        %921 = vmatpush1.xpose.msra.mxu0 0.0
        %922 = vmatprep.subr.mxu0 0.0
        %923 = vmatpush1.xpose.msra.mxu0 0.0
        %924 = vmatprep.subr.mxu0 0.0
        %925 = vmatpush1.xpose.msra.mxu0 0.0
        %926 = vmatprep.subr.mxu0 0.0
        %927 = vmatpush1.xpose.msra.mxu0 0.0
        %928 = vmatprep.subr.mxu0 0.0
        %929 = vmatpush1.xpose.msra.mxu0 0.0
        %930 = vmatprep.subr.mxu0 0.0
        %931 = vmatpush1.xpose.msra.mxu0 0.0
        %932 = vmatprep.subr.mxu0 0.0
        %933 = vmatpush1.xpose.msra.mxu0 0.0
        %934 = vmatprep.subr.mxu0 0.0
        %935 = vmatpush1.xpose.msra.mxu0 0.0
        %936 = vmatprep.subr.mxu0 0.0
        %937 = vmatpush1.xpose.msra.mxu0 0.0
        %938 = vmatprep.subr.mxu0 0.0
        %939 = vmatpush1.xpose.msra.mxu0 0.0
        %940 = vmatprep.subr.mxu0 0.0
        %941 = vmatpush1.xpose.msra.mxu0 0.0
        %942 = vmatprep.subr.mxu0 0.0
        %943 = vmatpush1.xpose.msra.mxu0 0.0
        %944 = vmatprep.subr.mxu0 0.0
        %945 = vmatpush1.xpose.msra.mxu0 0.0
        %946 = vmatprep.subr.mxu0 0.0
        %947 = vmatpush1.xpose.msra.mxu0 0.0
        %948 = vmatprep.subr.mxu0 0.0
        %949 = vmatpush1.xpose.msra.mxu0 0.0
        %950 = vmatprep.subr.mxu0 0.0
        %951 = vmatpush1.xpose.msra.mxu0 %v918
        %952 = vmatprep.subr.mxu0 0.0
        %953 = vmatpush2.xpose.msra.mxu0 0.0
        %954 = vmatprep.subr.mxu0 0.0
        %955 = vmatpush2.xpose.msra.mxu0 0.0
        %956 = vmatprep.subr.mxu0 0.0
        %957 = vmatpush2.xpose.msra.mxu0 0.0
        %958 = vmatprep.subr.mxu0 0.0
        %959 = vmatpush2.xpose.msra.mxu0 0.0
        %960 = vmatprep.subr.mxu0 0.0
        %961 = vmatpush2.xpose.msra.mxu0 0.0
        %962 = vmatprep.subr.mxu0 0.0
        %963 = vmatpush2.xpose.msra.mxu0 0.0
        %964 = vmatprep.subr.mxu0 0.0
        %965 = vmatpush2.xpose.msra.mxu0 0.0
        %966 = vmatprep.subr.mxu0 0.0
        %967 = vmatpush2.xpose.msra.mxu0 0.0
        %968 = vmatprep.subr.mxu0 0.0
        %969 = vmatpush2.xpose.msra.mxu0 0.0
        %970 = vmatprep.subr.mxu0 0.0
        %971 = vmatpush2.xpose.msra.mxu0 0.0
        %972 = vmatprep.subr.mxu0 0.0
        %973 = vmatpush2.xpose.msra.mxu0 0.0
        %974 = vmatprep.subr.mxu0 0.0
        %975 = vmatpush2.xpose.msra.mxu0 0.0
        %976 = vmatprep.subr.mxu0 0.0
        %977 = vmatpush2.xpose.msra.mxu0 0.0
        %978 = vmatprep.subr.mxu0 0.0
        %979 = vmatpush2.xpose.msra.mxu0 0.0
        %980 = vmatprep.subr.mxu0 0.0
        %981 = vmatpush2.xpose.msra.mxu0 0.0
        %982 = vmatprep.subr.mxu0 0.0
        %983 = vmatpush2.xpose.msra.mxu0 0.0
        %984 = vmatprep.mubr.f32.mxu0 0.0
        %985 = vmatmul.mubr.f32.gmra.mxu0 %v916
        %v986 = vpop.f32.mrf.mxu0
        %v987 = vadd.f32 0.0, %v986
        %v988 = vpop.f32.mrf.mxu0
        %989 = vdwg.mxu0
        %v990 = vsel %vm691, -1e+28, %v987
        %v991 = vsel %vm694, %v990, -inf
        %v992 = vrot.slane %v991, 4
        %v993 = vmax.f32 %v991, %v992
        %v994 = vrot.slane %v993, 2
        %v995 = vmax.f32 %v993, %v994
        %v996 = vrot.slane %v995, 1
        %v997 = vmax.f32 %v995, %v996
        %v998 = vsub.f32 %v990, %v997
        %v999 = vmul.f32 %v998, 1.442695
        %v1000 = vpow.pop %v999
        %v1001 = vsel %vm694, %v1000, 0.0
        %v1002 = vrot.slane %v1001, 4
        %v1003 = vadd.f32 %v1001, %v1002
        %v1004 = vrot.slane %v1003, 2
        %v1005 = vadd.f32 %v1003, %v1004
        %v1006 = vrot.slane %v1005, 1
        %v1007 = vadd.f32 %v1005, %v1006
        %v1008 = vrcp.pop %v1007
        %v1009 = vmul.f32 %v1007, %v1008
        %v1010 = vsub.f32 2.0, %v1009
        %v1011 = vmul.f32 %v1008, %v1010
        %v1012 = vmul.f32 %v1000, %v1011
        %v1013 = vsel %vm694, %v1012, 0.0
        %1014 = vadd.xlane.f32.xlu0 %v1013
        %v1015 = vpop.xlane.xlu0 %1014
        %vm1016 = vcmask 195712
        %1017 = vst.msk [vmem:[#allocation4] sm:$0xff] %vm1016, %v1015
        %v1018 = vld [vmem:[#allocation2] sm:$0xff]
        %v1019 = vld [vmem:[#allocation3] sm:$0xff]
        %1021 = vrot.lane.b32.xlu0 %v1019, 104
        %v1022 = vpop.permute.xlu0 %1021
        %1024 = vrot.lane.b32.xlu0 %v1018, 104
        %v1025 = vpop.permute.xlu0 %1024
        %v1026 = vsel %vm694, %v1022, 0
        %v1028 = vsel %vm694, %v1025, 0
        %1030 = vmatprep.subr.mxu0 0.0
        %1031 = vmatpush1.xpose.msra.mxu0 0.0
        %1032 = vmatprep.subr.mxu0 0.0
        %1033 = vmatpush1.xpose.msra.mxu0 0.0
        %1034 = vmatprep.subr.mxu0 0.0
        %1035 = vmatpush1.xpose.msra.mxu0 0.0
        %1036 = vmatprep.subr.mxu0 0.0
        %1037 = vmatpush1.xpose.msra.mxu0 0.0
        %1038 = vmatprep.subr.mxu0 0.0
        %1039 = vmatpush1.xpose.msra.mxu0 0.0
        %1040 = vmatprep.subr.mxu0 0.0
        %1041 = vmatpush1.xpose.msra.mxu0 0.0
        %1042 = vmatprep.subr.mxu0 0.0
        %1043 = vmatpush1.xpose.msra.mxu0 0.0
        %1044 = vmatprep.subr.mxu0 0.0
        %1045 = vmatpush1.xpose.msra.mxu0 0.0
        %1046 = vmatprep.subr.mxu0 0.0
        %1047 = vmatpush1.xpose.msra.mxu0 0.0
        %1048 = vmatprep.subr.mxu0 0.0
        %1049 = vmatpush1.xpose.msra.mxu0 0.0
        %1050 = vmatprep.subr.mxu0 0.0
        %1051 = vmatpush1.xpose.msra.mxu0 0.0
        %1052 = vmatprep.subr.mxu0 0.0
        %1053 = vmatpush1.xpose.msra.mxu0 0.0
        %1054 = vmatprep.subr.mxu0 0.0
        %1055 = vmatpush1.xpose.msra.mxu0 0.0
        %1056 = vmatprep.subr.mxu0 0.0
        %1057 = vmatpush1.xpose.msra.mxu0 0.0
        %1058 = vmatprep.subr.mxu0 0.0
        %1059 = vmatpush1.xpose.msra.mxu0 0.0
        %1060 = vmatprep.subr.mxu0 0.0
        %1061 = vmatpush1.xpose.msra.mxu0 %v1028
        %1062 = vmatprep.subr.mxu0 0.0
        %1063 = vmatpush2.xpose.msra.mxu0 0.0
        %1064 = vmatprep.subr.mxu0 0.0
        %1065 = vmatpush2.xpose.msra.mxu0 0.0
        %1066 = vmatprep.subr.mxu0 0.0
        %1067 = vmatpush2.xpose.msra.mxu0 0.0
        %1068 = vmatprep.subr.mxu0 0.0
        %1069 = vmatpush2.xpose.msra.mxu0 0.0
        %1070 = vmatprep.subr.mxu0 0.0
        %1071 = vmatpush2.xpose.msra.mxu0 0.0
        %1072 = vmatprep.subr.mxu0 0.0
        %1073 = vmatpush2.xpose.msra.mxu0 0.0
        %1074 = vmatprep.subr.mxu0 0.0
        %1075 = vmatpush2.xpose.msra.mxu0 0.0
        %1076 = vmatprep.subr.mxu0 0.0
        %1077 = vmatpush2.xpose.msra.mxu0 0.0
        %1078 = vmatprep.subr.mxu0 0.0
        %1079 = vmatpush2.xpose.msra.mxu0 0.0
        %1080 = vmatprep.subr.mxu0 0.0
        %1081 = vmatpush2.xpose.msra.mxu0 0.0
        %1082 = vmatprep.subr.mxu0 0.0
        %1083 = vmatpush2.xpose.msra.mxu0 0.0
        %1084 = vmatprep.subr.mxu0 0.0
        %1085 = vmatpush2.xpose.msra.mxu0 0.0
        %1086 = vmatprep.subr.mxu0 0.0
        %1087 = vmatpush2.xpose.msra.mxu0 0.0
        %1088 = vmatprep.subr.mxu0 0.0
        %1089 = vmatpush2.xpose.msra.mxu0 0.0
        %1090 = vmatprep.subr.mxu0 0.0
        %1091 = vmatpush2.xpose.msra.mxu0 0.0
        %1092 = vmatprep.subr.mxu0 0.0
        %1093 = vmatpush2.xpose.msra.mxu0 0.0
        %1094 = vmatprep.mubr.f32.mxu0 0.0
        %1095 = vmatmul.mubr.f32.gmra.mxu0 %v1026
        %v1096 = vpop.f32.mrf.mxu0
        %v1097 = vadd.f32 0.0, %v1096
        %v1098 = vpop.f32.mrf.mxu0
        %1099 = vdwg.mxu0
        %v1100 = vsel %vm691, -1e+28, %v1097
        %v1101 = vsel %vm694, %v1100, -inf
        %v1102 = vrot.slane %v1101, 4
        %v1103 = vmax.f32 %v1101, %v1102
        %v1104 = vrot.slane %v1103, 2
        %v1105 = vmax.f32 %v1103, %v1104
        %v1106 = vrot.slane %v1105, 1
        %v1107 = vmax.f32 %v1105, %v1106
        %v1108 = vsub.f32 %v1100, %v1107
        %v1109 = vmul.f32 %v1108, 1.442695
        %v1110 = vpow.pop %v1109
        %v1111 = vsel %vm694, %v1110, 0.0
        %v1112 = vrot.slane %v1111, 4
        %v1113 = vadd.f32 %v1111, %v1112
        %v1114 = vrot.slane %v1113, 2
        %v1115 = vadd.f32 %v1113, %v1114
        %v1116 = vrot.slane %v1115, 1
        %v1117 = vadd.f32 %v1115, %v1116
        %v1118 = vrcp.pop %v1117
        %v1119 = vmul.f32 %v1117, %v1118
        %v1120 = vsub.f32 2.0, %v1119
        %v1121 = vmul.f32 %v1118, %v1120
        %v1122 = vmul.f32 %v1110, %v1121
        %v1123 = vsel %vm694, %v1122, 0.0
        %1124 = vadd.xlane.f32.xlu0 %v1123
        %v1125 = vpop.xlane.xlu0 %1124
        %vm1126 = vcmask 261312
        %1127 = vst.msk [vmem:[#allocation4] sm:$0xff] %vm1126, %v1125
        %v1128 = vld [vmem:[#allocation4] sm:$0xff]
        %v1129 = vmul.f32 %v528, %v1128
        %v1130 = vld [vmem:[#allocation16] sm:$0xff]
        %v1131 = vld [vmem:[#allocation16 + $0x8] sm:$0xff]
        %v1132 = vld [vmem:[#allocation16 + $0x10] sm:$0xff]
        %v1133 = vld [vmem:[#allocation16 + $0x18] sm:$0xff]
        %v1134 = vld [vmem:[%s7] sm:$0x1]
        %v1136 = vlaneseq
        %v1137 = vshrl.u32 %v1136, 7
        %v1138 = vsub.s32 0, %v1137
        %v1139 = vrot.slane %v1134, %v1138
        %v1142 = vsel %vm457, %v1129, 0
        %1144 = vmatprep.subr.mxu0 0.0
        %1145 = vmatpush1.msra.mxu0 0.0
        %1146 = vmatprep.subr.mxu0 0.0
        %1147 = vmatpush1.msra.mxu0 0.0
        %1148 = vmatprep.subr.mxu0 0.0
        %1149 = vmatpush1.msra.mxu0 0.0
        %1150 = vmatprep.subr.mxu0 0.0
        %1151 = vmatpush1.msra.mxu0 0.0
        %1152 = vmatprep.subr.mxu0 0.0
        %1153 = vmatpush1.msra.mxu0 0.0
        %1154 = vmatprep.subr.mxu0 0.0
        %1155 = vmatpush1.msra.mxu0 0.0
        %1156 = vmatprep.subr.mxu0 0.0
        %1157 = vmatpush1.msra.mxu0 0.0
        %1158 = vmatprep.subr.mxu0 0.0
        %1159 = vmatpush1.msra.mxu0 0.0
        %1160 = vmatprep.subr.mxu0 0.0
        %1161 = vmatpush1.msra.mxu0 0.0
        %1162 = vmatprep.subr.mxu0 0.0
        %1163 = vmatpush1.msra.mxu0 0.0
        %1164 = vmatprep.subr.mxu0 0.0
        %1165 = vmatpush1.msra.mxu0 0.0
        %1166 = vmatprep.subr.mxu0 0.0
        %1167 = vmatpush1.msra.mxu0 0.0
        %1168 = vmatprep.subr.mxu0 0.0
        %1169 = vmatpush1.msra.mxu0 %v1133
        %1170 = vmatprep.subr.mxu0 0.0
        %1171 = vmatpush1.msra.mxu0 %v1132
        %1172 = vmatprep.subr.mxu0 0.0
        %1173 = vmatpush1.msra.mxu0 %v1131
        %1174 = vmatprep.subr.mxu0 0.0
        %1175 = vmatpush1.msra.mxu0 %v1130
        %1176 = vmatprep.subr.mxu0 0.0
        %1177 = vmatpush2.msra.mxu0 0.0
        %1178 = vmatprep.subr.mxu0 0.0
        %1179 = vmatpush2.msra.mxu0 0.0
        %1180 = vmatprep.subr.mxu0 0.0
        %1181 = vmatpush2.msra.mxu0 0.0
        %1182 = vmatprep.subr.mxu0 0.0
        %1183 = vmatpush2.msra.mxu0 0.0
        %1184 = vmatprep.subr.mxu0 0.0
        %1185 = vmatpush2.msra.mxu0 0.0
        %1186 = vmatprep.subr.mxu0 0.0
        %1187 = vmatpush2.msra.mxu0 0.0
        %1188 = vmatprep.subr.mxu0 0.0
        %1189 = vmatpush2.msra.mxu0 0.0
        %1190 = vmatprep.subr.mxu0 0.0
        %1191 = vmatpush2.msra.mxu0 0.0
        %1192 = vmatprep.subr.mxu0 0.0
        %1193 = vmatpush2.msra.mxu0 0.0
        %1194 = vmatprep.subr.mxu0 0.0
        %1195 = vmatpush2.msra.mxu0 0.0
        %1196 = vmatprep.subr.mxu0 0.0
        %1197 = vmatpush2.msra.mxu0 0.0
        %1198 = vmatprep.subr.mxu0 0.0
        %1199 = vmatpush2.msra.mxu0 0.0
        %1200 = vmatprep.subr.mxu0 0.0
        %1201 = vmatpush2.msra.mxu0 0.0
        %1202 = vmatprep.subr.mxu0 0.0
        %1203 = vmatpush2.msra.mxu0 0.0
        %1204 = vmatprep.subr.mxu0 0.0
        %1205 = vmatpush2.msra.mxu0 0.0
        %1206 = vmatprep.subr.mxu0 0.0
        %1207 = vmatpush2.msra.mxu0 0.0
        %1208 = vmatprep.mubr.f32.mxu0 0.0
        %1209 = vmatmul.mubr.f32.gmra.mxu0 %v1142
        %v1210 = vpop.f32.mrf.mxu0
        %v1211 = vadd.f32 %v1139, %v1210
        %v1212 = vpop.f32.mrf.mxu0
        %1213 = vdwg.mxu0
        %1214 = vst.msk [vmem:[%s449] sm:$0xff] %vm457, %v1211
        %s1215 = sand.u32 %s221, 1
        %s1216 = scalar_lea.sflag [#allocation7], %s1215
        %s1217 = sand.u32 %s221, 1
        %s1218 = smul.addr %s1217, 8
        %s1219 = scalar_lea.vmem [#allocation17], %s1218
        // Predicated region
        $region81: #{tpu_custom_call.1} parent=51 // pred_check
          %p1220 = pneg %p231
        $region82: #{tpu_custom_call.1} parent=51 // pred_check_branch
          %1222 = sbr.rel (%p1220) target = $region84
        $region83: #{tpu_custom_call.1} parent=51 // pred_region
          %s1224 = ssub.s32 128, 128
          %1225 = vsyncadd %s1216, %s1224
          %s1226 = smul.addr %s30, 128
          %s1227 = scalar_lea.hbm %s8, %s1226
          %s1229 = sshll.u32 %s1219, 4
          %s1230 = int_to_ptr.vmem [resolvable:$true] %s1229
          %1232 = dma.vmem_to_hbm [thread:$0]  %s1230, 128, %s1227, %s1216
        $region84: #{tpu_custom_call.1} parent=51 // pred_fallthru
          _
      $region52: #{tpu_custom_call.1} parent=5 // pred_fallthru
        _
      %p1233 = scmp.le.s32.totalorder 2, %s25
      // Predicated region
      $region85: #{tpu_custom_call.1} parent=5 // pred_check
        %p1234 = pneg %p1233
      $region86: #{tpu_custom_call.1} parent=5 // pred_check_branch
        %1236 = sbr.rel (%p1234) target = $region88
      $region87: #{tpu_custom_call.1} parent=5 // pred_region
        %s1237 = ssub.s32 %s25, 2
        // Predicated region
        $region89: #{tpu_custom_call.1} parent=87 // pred_check
          %p1238 = pneg %p237
        $region90: #{tpu_custom_call.1} parent=87 // pred_check_branch
          %1240 = sbr.rel (%p1238) target = $region92
        $region91: #{tpu_custom_call.1} parent=87 // pred_region
          %s1241 = sand.u32 %s222, 1
          %s1242 = scalar_lea.sflag [#allocation7], %s1241
          %s1243 = sand.u32 %s222, 1
          %s1244 = smul.addr %s1243, 8
          %s1245 = scalar_lea.vmem [#allocation17], %s1244
          %1246 = dma.done %s1242, 128
        $region92: #{tpu_custom_call.1} parent=87 // pred_fallthru
          _
      $region88: #{tpu_custom_call.1} parent=5 // pred_fallthru
        _
    $region6: #{tpu_custom_call.1} parent=1 // loop_footer
      %s29 = sadd.s32 1, %s25
    $region7: #{tpu_custom_call.1} parent=1 // loop_footer_branch
      %24 = sbr.rel target = $region3
    $region8: #{tpu_custom_call.1} parent=1 // loop_exit
      _
    %1247 = vsyncpa [#allocation6], 1
    %s1248 = scalar_lea.sflag [#allocation6], 1
    %1249 = vsyncpa %s1248, 1
    %1250 = vsyncpa [#allocation9], 1
    %s1251 = scalar_lea.sflag [#allocation9], 1
    %1252 = vsyncpa %s1251, 1
    %1253 = vsyncpa [#allocation12], 1
    %1254 = vsyncpa [#allocation15], 1
    %1255 = vsyncpa [#allocation7], 1
    %s1256 = scalar_lea.sflag [#allocation7], 1
    %1257 = vsyncpa %s1256, 1

</llo_original>
